<compile_context>
chip_gen: v5e
topology: v5e:2x2
jax: 0.10.0
libtpu: 0.0.40
codegen_flags: <defaults>
</compile_context>

<pallas_src>
import functools
import math

import jax
import jax.numpy as jnp
from jax import lax
from jax.experimental import pallas as pl
from jax.experimental.pallas import tpu as pltpu


def attention_block_kernel(x_ref, gamma_ref, beta_ref, gdown_ref, gup_ref,
                           wqkv_ref, bqkv_ref, wproj_ref, bproj_ref,
                           out_ref, a_ref, *, num_heads, eps, t_valid, tq):
    x = x_ref[0]                                   # (C, Tp) float32
    C, Tp = x.shape
    ch = C // num_heads

    # Validity over the (possibly padded) lane axis, computed once per step.
    if Tp != t_valid:
        col = lax.broadcasted_iota(jnp.int32, (1, Tp), 1)
        valid = col < t_valid                                     # (1, Tp) bool
        mask_bias = jnp.where(valid, jnp.float32(0.0),
                              jnp.float32(-1e30))                 # (1, Tp) f32
    else:
        valid = None
        mask_bias = None

    # ---------------- GroupNorm(num_groups, C), centered two-pass ------------
    # gdown: (G, C) one-hot / n  (n = ch_group * T);  gup: (C, G) one-hot.
    s = jnp.sum(x, axis=1, keepdims=True)                         # (C, 1)
    mean_g = jnp.dot(gdown_ref[...], s,
                     preferred_element_type=jnp.float32)          # (G, 1)
    mean_c = jnp.dot(gup_ref[...], mean_g,
                     preferred_element_type=jnp.float32)          # (C, 1)
    xc = x - mean_c
    xc2 = xc * xc
    if valid is not None:
        xc2 = jnp.where(valid, xc2, 0.0)            # drop padded columns
    ss = jnp.sum(xc2, axis=1, keepdims=True)                      # (C, 1)
    var_g = jnp.dot(gdown_ref[...], ss,
                    preferred_element_type=jnp.float32)           # (G, 1)
    var_c = jnp.dot(gup_ref[...], var_g,
                    preferred_element_type=jnp.float32)           # (C, 1)
    inv = lax.rsqrt(var_c + eps)
    xn = (xc * (inv * gamma_ref[...]) + beta_ref[...]).astype(jnp.bfloat16)

    # ---------------- qkv = Conv1d(C, 3C, 1); attention scale pre-folded -----
    # Single bf16 cast right after the bias add; q/k/v slice from this slab.
    qkv = (jnp.dot(wqkv_ref[...], xn, preferred_element_type=jnp.float32)
           + bqkv_ref[...]).astype(jnp.bfloat16)                  # (3C, Tp)

    # ---------------- QKVAttentionLegacy, query-tiled exact softmax ----------
    # num_heads and the q-tile count are small and static -> unrolled Python
    # loops with static slices (offsets are multiples of the sublane/lane
    # granules; ch % 8 == 0 in practice).  Per-head outputs go into the
    # (C, Tp) bf16 scratch so ONE K=C projection can run afterwards.
    n_qt = Tp // tq
    for h in range(num_heads):
        base = h * 3 * ch
        q = qkv[base:base + ch]                    # (ch, Tp) bf16
        k = qkv[base + ch:base + 2 * ch]           # (ch, Tp) bf16
        v = qkv[base + 2 * ch:base + 3 * ch]       # (ch, Tp) bf16
        for qt in range(n_qt):
            qs = qt * tq
            q_t = q[:, qs:qs + tq]                 # (ch, tq) bf16
            # w[t, s] = sum_c q[c, t] * k[c, s]   (contract dim 0 of both)
            w = lax.dot_general(q_t, k, (((0,), (0,)), ((), ())),
                                preferred_element_type=jnp.float32)  # (tq, Tp)
            if mask_bias is not None:
                w = w + mask_bias                  # hoisted additive key mask
            w = w - jnp.max(w, axis=-1, keepdims=True)
            e = jnp.exp(w)                                              # f32
            p = (e * pl.reciprocal(jnp.sum(e, axis=-1, keepdims=True),
                                   approx=True)).astype(jnp.bfloat16)  # (tq,Tp)
            # a[c, t] = sum_s v[c, s] * p[t, s]   (contract dim 1 with dim 1)
            a_t = lax.dot_general(v, p, (((1,), (1,)), ((), ())),
                                  preferred_element_type=jnp.float32)  # (ch,tq)
            a_ref[h * ch:(h + 1) * ch, qs:qs + tq] = a_t.astype(jnp.bfloat16)

    # ---------------- proj_out (single K=C matmul) + residual ----------------
    proj = jnp.dot(wproj_ref[...], a_ref[...],
                   preferred_element_type=jnp.float32)            # (C, Tp)
    out_ref[0] = x + proj + bproj_ref[...]


def attention_block(x, params, *, num_heads, num_groups, eps=1e-5):
    """x: [B, C, H, W] float32 (NCHW) -> [B, C, H, W]."""
    B, C, H, W = x.shape
    T = H * W
    ch = C // num_heads
    ch_group = C // num_groups

    # Lane-dense layout: pad spatial axis to a multiple of 128.
    Tp = max(128, ((T + 127) // 128) * 128)
    x3 = x.reshape(B, C, T)
    if Tp != T:
        x3 = jnp.pad(x3, ((0, 0), (0, 0), (0, Tp - T)))

    # Query tile size: bounds the live logits to (tq, Tp) instead of (Tp, Tp).
    if Tp <= 512:
        tq = Tp
    elif Tp % 512 == 0:
        tq = 512
    elif Tp % 256 == 0:
        tq = 256
    else:
        tq = 128

    gamma = params["gamma"].reshape(C, 1).astype(jnp.float32)
    beta = params["beta"].reshape(C, 1).astype(jnp.float32)

    # Thin group reduce / broadcast matrices (replace the (C, C) gsame matrix).
    gid = jnp.arange(C) // ch_group
    one_hot = (gid[None, :] == jnp.arange(num_groups)[:, None]).astype(jnp.float32)
    gdown = one_hot / float(ch_group * T)          # (G, C), scaled by 1/n
    gup = one_hot.T                                # (C, G)

    # Fold the 1/ch**0.25 attention scale into the q and k rows of the qkv conv.
    scale = 1.0 / math.sqrt(math.sqrt(ch))
    row_in_head = jnp.arange(3 * C) % (3 * ch)
    row_scale = jnp.where(row_in_head < 2 * ch, scale, 1.0)[:, None]   # (3C, 1)
    wqkv_s = (params["wqkv"] * row_scale).astype(jnp.bfloat16)         # (3C, C)
    bqkv_s = (params["bqkv"].reshape(3 * C, 1) * row_scale).astype(jnp.float32)

    # Unsplit proj weight: one K=C matmul in the kernel.
    wproj = params["wproj"].astype(jnp.bfloat16)                       # (C, C)
    bproj = params["bproj"].reshape(C, 1).astype(jnp.float32)

    # Explicit scoped-VMEM budget (defaults: 16 MiB v5e / 32 MiB v6e,v7x).
    est = (
        4 * C * Tp * 4                       # x + out blocks, double-buffered f32
        + 3 * C * Tp * (4 + 2)               # f32 qkv matmul result + bf16 slab
        + C * Tp * 2                         # per-head output scratch (bf16)
        + tq * Tp * (4 + 4 + 2)              # logits f32 + exp f32 + bf16 probs
        + 2 * (3 * C * C + C * C) * 2        # qkv / proj weights (bf16, 2 bufs)
        + (2 << 20)                          # slack for small operands / spills
    )
    vmem_limit = int(min(max(est * 3 // 2, 32 << 20), 100 << 20))

    # Alias the padded input slab with the output (each batch block is fully
    # read before its output block is written back).  Only when padding made a
    # fresh buffer, so the caller's x is never written in place.
    io_alias = {0: 0} if Tp != T else {}

    kernel = functools.partial(attention_block_kernel,
                               num_heads=num_heads, eps=eps, t_valid=T, tq=tq)

    out3 = pl.pallas_call(
        kernel,
        out_shape=jax.ShapeDtypeStruct((B, C, Tp), jnp.float32),
        grid=(B,),
        in_specs=[
            pl.BlockSpec((1, C, Tp), lambda b: (b, 0, 0)),            # x
            pl.BlockSpec((C, 1), lambda b: (0, 0)),                   # gamma
            pl.BlockSpec((C, 1), lambda b: (0, 0)),                   # beta
            pl.BlockSpec((num_groups, C), lambda b: (0, 0)),          # gdown
            pl.BlockSpec((C, num_groups), lambda b: (0, 0)),          # gup
            pl.BlockSpec((3 * C, C), lambda b: (0, 0)),               # w_qkv (bf16)
            pl.BlockSpec((3 * C, 1), lambda b: (0, 0)),               # b_qkv
            pl.BlockSpec((C, C), lambda b: (0, 0)),                   # w_proj (bf16)
            pl.BlockSpec((C, 1), lambda b: (0, 0)),                   # b_proj
        ],
        out_specs=pl.BlockSpec((1, C, Tp), lambda b: (b, 0, 0)),
        scratch_shapes=[pltpu.VMEM((C, Tp), jnp.bfloat16)],           # head outputs
        input_output_aliases=io_alias,
        compiler_params=pltpu.CompilerParams(
            dimension_semantics=("parallel",),
            vmem_limit_bytes=vmem_limit),
    )(x3, gamma, beta, gdown, gup, wqkv_s, bqkv_s, wproj, bproj)

    return out3[:, :, :T].reshape(B, C, H, W)


def attention_block_reference(x, params, *, num_heads, num_groups, eps=1e-5):
    """Pure-JAX mirror of the PyTorch AttentionBlock._forward."""
    B, C, H, W = x.shape
    T = H * W
    xr = x.reshape(B, C, T)
    # GroupNorm
    xg = xr.reshape(B, num_groups, (C // num_groups) * T)
    mean = xg.mean(-1, keepdims=True)
    var = xg.var(-1, keepdims=True)
    xn = ((xg - mean) / jnp.sqrt(var + eps)).reshape(B, C, T)
    xn = xn * params["gamma"][None, :, None] + params["beta"][None, :, None]
    # qkv 1x1 conv
    qkv = jnp.einsum("oc,bct->bot", params["wqkv"], xn) + params["bqkv"][None, :, None]
    # QKVAttentionLegacy
    ch = C // num_heads
    qkv_h = qkv.reshape(B * num_heads, 3 * ch, T)
    q, k, v = qkv_h[:, :ch], qkv_h[:, ch:2 * ch], qkv_h[:, 2 * ch:]
    scale = 1.0 / math.sqrt(math.sqrt(ch))
    w = jnp.einsum("bct,bcs->bts", q * scale, k * scale)
    w = jax.nn.softmax(w.astype(jnp.float32), axis=-1)
    a = jnp.einsum("bts,bcs->bct", w, v).reshape(B, C, T)
    # proj_out + residual
    hp = jnp.einsum("oc,bct->bot", params["wproj"], a) + params["bproj"][None, :, None]
    return (xr + hp).reshape(B, C, H, W)


if __name__ == "__main__":
    B, C, H, W = 2, 64, 8, 8
    num_heads = 2
    num_groups = 32  # OpenAI normalization(channels) == GroupNorm(32, channels)

    key = jax.random.PRNGKey(0)
    kx, k1, k2, k3, k4 = jax.random.split(key, 5)

    x = jax.random.normal(kx, (B, C, H, W), dtype=jnp.float32)

    # Deterministic parameter init (shapes from AttentionBlock.__init__).
    # NOTE: the reference uses zero_module() on proj_out (zero-initialized);
    # nonzero values are used here so the full kernel path is exercised.
    params = {
        "gamma": jnp.ones((C,), jnp.float32),                       # GroupNorm weight
        "beta": jnp.zeros((C,), jnp.float32),                       # GroupNorm bias
        "wqkv": 0.05 * jax.random.normal(k1, (3 * C, C), jnp.float32),
        "bqkv": 0.05 * jax.random.normal(k2, (3 * C,), jnp.float32),
        "wproj": 0.05 * jax.random.normal(k3, (C, C), jnp.float32),
        "bproj": 0.05 * jax.random.normal(k4, (C,), jnp.float32),
    }

    out = attention_block(x, params, num_heads=num_heads, num_groups=num_groups)
    out = jax.block_until_ready(out)

    ref = attention_block_reference(x, params, num_heads=num_heads,
                                    num_groups=num_groups)
    ref = jax.block_until_ready(ref)

    assert out.shape == (B, C, H, W)
    assert jnp.allclose(out, ref, rtol=5e-2, atol=5e-2), (
        "mismatch vs pure-JAX reference")

    print("KERNEL_OK")
</pallas_src>

<mosaic_0001>
module attributes {stable_mosaic.version = 11 : i64} {
  func.func @attention_block_kernel(%arg0: i32, %arg1: memref<1x64x128xf32, #tpu.memory_space<vmem>>, %arg2: memref<64x1xf32, #tpu.memory_space<vmem>>, %arg3: memref<64x1xf32, #tpu.memory_space<vmem>>, %arg4: memref<32x64xf32, #tpu.memory_space<vmem>>, %arg5: memref<64x32xf32, #tpu.memory_space<vmem>>, %arg6: memref<192x64xbf16, #tpu.memory_space<vmem>>, %arg7: memref<192x1xf32, #tpu.memory_space<vmem>>, %arg8: memref<64x64xbf16, #tpu.memory_space<vmem>>, %arg9: memref<64x1xf32, #tpu.memory_space<vmem>>, %arg10: memref<1x64x128xf32, #tpu.memory_space<vmem>>, %arg11: memref<64x128xbf16, #tpu.memory_space<vmem>>) attributes {dimension_semantics = [#tpu.dimension_semantics<parallel>], iteration_bounds = array<i64: 2>, scalar_prefetch = 0 : i64, scratch_operands = 1 : i64, tpu.core_type = #tpu.core_type<tc>, window_params = [{transform_indices = @transform_0, window_bounds = array<i64: 1, 64, 128>}, {pipeline_mode = #tpu.pipeline_mode<synchronous>, transform_indices = @transform_1, window_bounds = array<i64: 64, 1>}, {pipeline_mode = #tpu.pipeline_mode<synchronous>, transform_indices = @transform_2, window_bounds = array<i64: 64, 1>}, {pipeline_mode = #tpu.pipeline_mode<synchronous>, transform_indices = @transform_3, window_bounds = array<i64: 32, 64>}, {pipeline_mode = #tpu.pipeline_mode<synchronous>, transform_indices = @transform_4, window_bounds = array<i64: 64, 32>}, {pipeline_mode = #tpu.pipeline_mode<synchronous>, transform_indices = @transform_5, window_bounds = array<i64: 192, 64>}, {pipeline_mode = #tpu.pipeline_mode<synchronous>, transform_indices = @transform_6, window_bounds = array<i64: 192, 1>}, {pipeline_mode = #tpu.pipeline_mode<synchronous>, transform_indices = @transform_7, window_bounds = array<i64: 64, 64>}, {pipeline_mode = #tpu.pipeline_mode<synchronous>, transform_indices = @transform_8, window_bounds = array<i64: 64, 1>}, {transform_indices = @transform_9, window_bounds = array<i64: 1, 64, 128>}]} {
    %c0 = arith.constant 0 : index
    %c0_0 = arith.constant 0 : index
    %c0_1 = arith.constant 0 : index
    %0 = vector.load %arg1[%c0, %c0_0, %c0_1] : memref<1x64x128xf32, #tpu.memory_space<vmem>>, vector<1x64x128xf32>
    %1 = vector.shape_cast %0 : vector<1x64x128xf32> to vector<64x128xf32>
    %2 = tpu.iota {dimensions = array<i32: 1>} : vector<1x128xi32>
    %c64_i32 = arith.constant 64 : i32
    %3 = vector.broadcast %c64_i32 : i32 to vector<1x128xi32>
    %4 = arith.cmpi slt, %2, %3 : vector<1x128xi32>
    %cst = arith.constant 0.000000e+00 : f32
    %cst_2 = arith.constant -1.000000e+30 : f32
    %5 = vector.broadcast %cst : f32 to vector<1x128xf32>
    %6 = vector.broadcast %cst_2 : f32 to vector<1x128xf32>
    %7 = arith.select %4, %5, %6 : vector<1x128xi1>, vector<1x128xf32>
    %cst_3 = arith.constant dense<0.000000e+00> : vector<64xf32>
    %8 = vector.multi_reduction <add>, %1, %cst_3 [1] : vector<64x128xf32> to vector<64xf32>
    %9 = vector.shape_cast %8 : vector<64xf32> to vector<64x1xf32>
    %c0_4 = arith.constant 0 : index
    %c0_5 = arith.constant 0 : index
    %10 = vector.load %arg4[%c0_4, %c0_5] : memref<32x64xf32, #tpu.memory_space<vmem>>, vector<32x64xf32>
    %cst_6 = arith.constant dense<0.000000e+00> : vector<32x1xf32>
    %11 = tpu.matmul %10, %9, %cst_6 {dimension_numbers = #tpu.dot_dimension_numbers<[1], [0], [0], [1], [0, 0, 1, 1], [], []>} : vector<32x64xf32>, vector<64x1xf32>, vector<32x1xf32> -> vector<32x1xf32>
    %c0_7 = arith.constant 0 : index
    %c0_8 = arith.constant 0 : index
    %12 = vector.load %arg5[%c0_7, %c0_8] : memref<64x32xf32, #tpu.memory_space<vmem>>, vector<64x32xf32>
    %cst_9 = arith.constant dense<0.000000e+00> : vector<64x1xf32>
    %13 = tpu.matmul %12, %11, %cst_9 {dimension_numbers = #tpu.dot_dimension_numbers<[1], [0], [0], [1], [0, 0, 1, 1], [], []>} : vector<64x32xf32>, vector<32x1xf32>, vector<64x1xf32> -> vector<64x1xf32>
    %14 = vector.broadcast %13 : vector<64x1xf32> to vector<64x128xf32>
    %15 = arith.subf %1, %14 : vector<64x128xf32>
    %16 = arith.mulf %15, %15 : vector<64x128xf32>
    %cst_10 = arith.constant 0.000000e+00 : f32
    %17 = vector.shape_cast %4 : vector<1x128xi1> to vector<1x128xi1>
    %18 = vector.broadcast %17 : vector<1x128xi1> to vector<64x128xi1>
    %19 = vector.broadcast %cst_10 : f32 to vector<64x128xf32>
    %20 = arith.select %18, %16, %19 : vector<64x128xi1>, vector<64x128xf32>
    %cst_11 = arith.constant dense<0.000000e+00> : vector<64xf32>
    %21 = vector.multi_reduction <add>, %20, %cst_11 [1] : vector<64x128xf32> to vector<64xf32>
    %22 = vector.shape_cast %21 : vector<64xf32> to vector<64x1xf32>
    %c0_12 = arith.constant 0 : index
    %c0_13 = arith.constant 0 : index
    %23 = vector.load %arg4[%c0_12, %c0_13] : memref<32x64xf32, #tpu.memory_space<vmem>>, vector<32x64xf32>
    %cst_14 = arith.constant dense<0.000000e+00> : vector<32x1xf32>
    %24 = tpu.matmul %23, %22, %cst_14 {dimension_numbers = #tpu.dot_dimension_numbers<[1], [0], [0], [1], [0, 0, 1, 1], [], []>} : vector<32x64xf32>, vector<64x1xf32>, vector<32x1xf32> -> vector<32x1xf32>
    %c0_15 = arith.constant 0 : index
    %c0_16 = arith.constant 0 : index
    %25 = vector.load %arg5[%c0_15, %c0_16] : memref<64x32xf32, #tpu.memory_space<vmem>>, vector<64x32xf32>
    %cst_17 = arith.constant dense<0.000000e+00> : vector<64x1xf32>
    %26 = tpu.matmul %25, %24, %cst_17 {dimension_numbers = #tpu.dot_dimension_numbers<[1], [0], [0], [1], [0, 0, 1, 1], [], []>} : vector<64x32xf32>, vector<32x1xf32>, vector<64x1xf32> -> vector<64x1xf32>
    %cst_18 = arith.constant 9.99999974E-6 : f32
    %27 = vector.broadcast %cst_18 : f32 to vector<64x1xf32>
    %28 = arith.addf %26, %27 : vector<64x1xf32>
    %29 = math.rsqrt %28 : vector<64x1xf32>
    %c0_19 = arith.constant 0 : index
    %c0_20 = arith.constant 0 : index
    %30 = vector.load %arg2[%c0_19, %c0_20] : memref<64x1xf32, #tpu.memory_space<vmem>>, vector<64x1xf32>
    %31 = arith.mulf %29, %30 : vector<64x1xf32>
    %32 = vector.broadcast %31 : vector<64x1xf32> to vector<64x128xf32>
    %33 = arith.mulf %15, %32 : vector<64x128xf32>
    %c0_21 = arith.constant 0 : index
    %c0_22 = arith.constant 0 : index
    %34 = vector.load %arg3[%c0_21, %c0_22] : memref<64x1xf32, #tpu.memory_space<vmem>>, vector<64x1xf32>
    %35 = vector.broadcast %34 : vector<64x1xf32> to vector<64x128xf32>
    %36 = arith.addf %33, %35 : vector<64x128xf32>
    %37 = arith.truncf %36 : vector<64x128xf32> to vector<64x128xbf16>
    %c0_23 = arith.constant 0 : index
    %c0_24 = arith.constant 0 : index
    %38 = vector.load %arg6[%c0_23, %c0_24] : memref<192x64xbf16, #tpu.memory_space<vmem>>, vector<192x64xbf16>
    %cst_25 = arith.constant dense<0.000000e+00> : vector<192x128xf32>
    %39 = tpu.matmul %38, %37, %cst_25 {dimension_numbers = #tpu.dot_dimension_numbers<[1], [0], [0], [1], [0, 0, 1, 1], [], []>} : vector<192x64xbf16>, vector<64x128xbf16>, vector<192x128xf32> -> vector<192x128xf32>
    %c0_26 = arith.constant 0 : index
    %c0_27 = arith.constant 0 : index
    %40 = vector.load %arg7[%c0_26, %c0_27] : memref<192x1xf32, #tpu.memory_space<vmem>>, vector<192x1xf32>
    %41 = vector.broadcast %40 : vector<192x1xf32> to vector<192x128xf32>
    %42 = arith.addf %39, %41 : vector<192x128xf32>
    %43 = arith.truncf %42 : vector<192x128xf32> to vector<192x128xbf16>
    %44 = vector.extract_strided_slice %43 {offsets = [0, 0], sizes = [32, 128], strides = [1, 1]} : vector<192x128xbf16> to vector<32x128xbf16>
    %45 = vector.extract_strided_slice %43 {offsets = [32, 0], sizes = [32, 128], strides = [1, 1]} : vector<192x128xbf16> to vector<32x128xbf16>
    %46 = vector.extract_strided_slice %43 {offsets = [64, 0], sizes = [32, 128], strides = [1, 1]} : vector<192x128xbf16> to vector<32x128xbf16>
    %cst_28 = arith.constant dense<0.000000e+00> : vector<128x128xf32>
    %47 = tpu.matmul %44, %45, %cst_28 {dimension_numbers = #tpu.dot_dimension_numbers<[0], [0], [1], [1], [0, 1, 1, 1], [], []>} : vector<32x128xbf16>, vector<32x128xbf16>, vector<128x128xf32> -> vector<128x128xf32>
    %48 = vector.broadcast %7 : vector<1x128xf32> to vector<128x128xf32>
    %49 = arith.addf %47, %48 : vector<128x128xf32>
    %cst_29 = arith.constant dense<0xFF800000> : vector<128xf32>
    %50 = vector.multi_reduction <maximumf>, %49, %cst_29 [1] : vector<128x128xf32> to vector<128xf32>
    %51 = vector.shape_cast %50 : vector<128xf32> to vector<128x1xf32>
    %52 = vector.broadcast %51 : vector<128x1xf32> to vector<128x128xf32>
    %53 = arith.subf %49, %52 : vector<128x128xf32>
    %54 = math.exp %53 : vector<128x128xf32>
    %cst_30 = arith.constant dense<0.000000e+00> : vector<128xf32>
    %55 = vector.multi_reduction <add>, %54, %cst_30 [1] : vector<128x128xf32> to vector<128xf32>
    %56 = vector.shape_cast %55 : vector<128xf32> to vector<128x1xf32>
    %57 = tpu.reciprocal %56 {approx = true} : vector<128x1xf32> -> vector<128x1xf32>
    %58 = vector.broadcast %57 : vector<128x1xf32> to vector<128x128xf32>
    %59 = arith.mulf %54, %58 : vector<128x128xf32>
    %60 = arith.truncf %59 : vector<128x128xf32> to vector<128x128xbf16>
    %cst_31 = arith.constant dense<0.000000e+00> : vector<32x128xf32>
    %61 = tpu.matmul %46, %60, %cst_31 {dimension_numbers = #tpu.dot_dimension_numbers<[1], [1], [0], [0], [0, 0, 1, 0], [], []>} : vector<32x128xbf16>, vector<128x128xbf16>, vector<32x128xf32> -> vector<32x128xf32>
    %62 = arith.truncf %61 : vector<32x128xf32> to vector<32x128xbf16>
    %c0_32 = arith.constant 0 : index
    %c0_33 = arith.constant 0 : index
    %63 = vector.load %arg11[%c0_32, %c0_33] : memref<64x128xbf16, #tpu.memory_space<vmem>>, vector<32x128xbf16>
    tpu.vector_store %arg11[%c0_32, %c0_33], %62 {strides = array<i32>} : memref<64x128xbf16, #tpu.memory_space<vmem>>, vector<32x128xbf16>,
    %64 = vector.extract_strided_slice %43 {offsets = [96, 0], sizes = [32, 128], strides = [1, 1]} : vector<192x128xbf16> to vector<32x128xbf16>
    %65 = vector.extract_strided_slice %43 {offsets = [128, 0], sizes = [32, 128], strides = [1, 1]} : vector<192x128xbf16> to vector<32x128xbf16>
    %66 = vector.extract_strided_slice %43 {offsets = [160, 0], sizes = [32, 128], strides = [1, 1]} : vector<192x128xbf16> to vector<32x128xbf16>
    %cst_34 = arith.constant dense<0.000000e+00> : vector<128x128xf32>
    %67 = tpu.matmul %64, %65, %cst_34 {dimension_numbers = #tpu.dot_dimension_numbers<[0], [0], [1], [1], [0, 1, 1, 1], [], []>} : vector<32x128xbf16>, vector<32x128xbf16>, vector<128x128xf32> -> vector<128x128xf32>
    %68 = vector.broadcast %7 : vector<1x128xf32> to vector<128x128xf32>
    %69 = arith.addf %67, %68 : vector<128x128xf32>
    %cst_35 = arith.constant dense<0xFF800000> : vector<128xf32>
    %70 = vector.multi_reduction <maximumf>, %69, %cst_35 [1] : vector<128x128xf32> to vector<128xf32>
    %71 = vector.shape_cast %70 : vector<128xf32> to vector<128x1xf32>
    %72 = vector.broadcast %71 : vector<128x1xf32> to vector<128x128xf32>
    %73 = arith.subf %69, %72 : vector<128x128xf32>
    %74 = math.exp %73 : vector<128x128xf32>
    %cst_36 = arith.constant dense<0.000000e+00> : vector<128xf32>
    %75 = vector.multi_reduction <add>, %74, %cst_36 [1] : vector<128x128xf32> to vector<128xf32>
    %76 = vector.shape_cast %75 : vector<128xf32> to vector<128x1xf32>
    %77 = tpu.reciprocal %76 {approx = true} : vector<128x1xf32> -> vector<128x1xf32>
    %78 = vector.broadcast %77 : vector<128x1xf32> to vector<128x128xf32>
    %79 = arith.mulf %74, %78 : vector<128x128xf32>
    %80 = arith.truncf %79 : vector<128x128xf32> to vector<128x128xbf16>
    %cst_37 = arith.constant dense<0.000000e+00> : vector<32x128xf32>
    %81 = tpu.matmul %66, %80, %cst_37 {dimension_numbers = #tpu.dot_dimension_numbers<[1], [1], [0], [0], [0, 0, 1, 0], [], []>} : vector<32x128xbf16>, vector<128x128xbf16>, vector<32x128xf32> -> vector<32x128xf32>
    %82 = arith.truncf %81 : vector<32x128xf32> to vector<32x128xbf16>
    %c32 = arith.constant 32 : index
    %c0_38 = arith.constant 0 : index
    %83 = vector.load %arg11[%c32, %c0_38] : memref<64x128xbf16, #tpu.memory_space<vmem>>, vector<32x128xbf16>
    tpu.vector_store %arg11[%c32, %c0_38], %82 {strides = array<i32>} : memref<64x128xbf16, #tpu.memory_space<vmem>>, vector<32x128xbf16>,
    %c0_39 = arith.constant 0 : index
    %c0_40 = arith.constant 0 : index
    %84 = vector.load %arg8[%c0_39, %c0_40] : memref<64x64xbf16, #tpu.memory_space<vmem>>, vector<64x64xbf16>
    %c0_41 = arith.constant 0 : index
    %c0_42 = arith.constant 0 : index
    %85 = vector.load %arg11[%c0_41, %c0_42] : memref<64x128xbf16, #tpu.memory_space<vmem>>, vector<64x128xbf16>
    %cst_43 = arith.constant dense<0.000000e+00> : vector<64x128xf32>
    %86 = tpu.matmul %84, %85, %cst_43 {dimension_numbers = #tpu.dot_dimension_numbers<[1], [0], [0], [1], [0, 0, 1, 1], [], []>} : vector<64x64xbf16>, vector<64x128xbf16>, vector<64x128xf32> -> vector<64x128xf32>
    %87 = arith.addf %1, %86 : vector<64x128xf32>
    %c0_44 = arith.constant 0 : index
    %c0_45 = arith.constant 0 : index
    %88 = vector.load %arg9[%c0_44, %c0_45] : memref<64x1xf32, #tpu.memory_space<vmem>>, vector<64x1xf32>
    %89 = vector.broadcast %88 : vector<64x1xf32> to vector<64x128xf32>
    %90 = arith.addf %87, %89 : vector<64x128xf32>
    %c0_46 = arith.constant 0 : index
    %c0_47 = arith.constant 0 : index
    %c0_48 = arith.constant 0 : index
    %91 = vector.load %arg10[%c0_46, %c0_47, %c0_48] : memref<1x64x128xf32, #tpu.memory_space<vmem>>, vector<1x64x128xf32>
    %92 = vector.shape_cast %91 : vector<1x64x128xf32> to vector<64x128xf32>
    %93 = vector.shape_cast %90 : vector<64x128xf32> to vector<1x64x128xf32>
    tpu.vector_store %arg10[%c0_46, %c0_47, %c0_48], %93 {strides = array<i32>} : memref<1x64x128xf32, #tpu.memory_space<vmem>>, vector<1x64x128xf32>,
    return
  }
  func.func @transform_0(%arg0: i32) -> (i32, i32, i32) {
    %c0_i32 = arith.constant 0 : i32
    %c0_i32_0 = arith.constant 0 : i32
    %c0_i32_1 = arith.constant 0 : i32
    return %arg0, %c0_i32, %c0_i32_0 : i32, i32, i32
  }
  func.func @transform_1(%arg0: i32) -> (i32, i32) {
    %c0_i32 = arith.constant 0 : i32
    %c0_i32_0 = arith.constant 0 : i32
    %c0_i32_1 = arith.constant 0 : i32
    return %c0_i32, %c0_i32_0 : i32, i32
  }
  func.func @transform_2(%arg0: i32) -> (i32, i32) {
    %c0_i32 = arith.constant 0 : i32
    %c0_i32_0 = arith.constant 0 : i32
    %c0_i32_1 = arith.constant 0 : i32
    return %c0_i32, %c0_i32_0 : i32, i32
  }
  func.func @transform_3(%arg0: i32) -> (i32, i32) {
    %c0_i32 = arith.constant 0 : i32
    %c0_i32_0 = arith.constant 0 : i32
    %c0_i32_1 = arith.constant 0 : i32
    return %c0_i32, %c0_i32_0 : i32, i32
  }
  func.func @transform_4(%arg0: i32) -> (i32, i32) {
    %c0_i32 = arith.constant 0 : i32
    %c0_i32_0 = arith.constant 0 : i32
    %c0_i32_1 = arith.constant 0 : i32
    return %c0_i32, %c0_i32_0 : i32, i32
  }
  func.func @transform_5(%arg0: i32) -> (i32, i32) {
    %c0_i32 = arith.constant 0 : i32
    %c0_i32_0 = arith.constant 0 : i32
    %c0_i32_1 = arith.constant 0 : i32
    return %c0_i32, %c0_i32_0 : i32, i32
  }
  func.func @transform_6(%arg0: i32) -> (i32, i32) {
    %c0_i32 = arith.constant 0 : i32
    %c0_i32_0 = arith.constant 0 : i32
    %c0_i32_1 = arith.constant 0 : i32
    return %c0_i32, %c0_i32_0 : i32, i32
  }
  func.func @transform_7(%arg0: i32) -> (i32, i32) {
    %c0_i32 = arith.constant 0 : i32
    %c0_i32_0 = arith.constant 0 : i32
    %c0_i32_1 = arith.constant 0 : i32
    return %c0_i32, %c0_i32_0 : i32, i32
  }
  func.func @transform_8(%arg0: i32) -> (i32, i32) {
    %c0_i32 = arith.constant 0 : i32
    %c0_i32_0 = arith.constant 0 : i32
    %c0_i32_1 = arith.constant 0 : i32
    return %c0_i32, %c0_i32_0 : i32, i32
  }
  func.func @transform_9(%arg0: i32) -> (i32, i32, i32) {
    %c0_i32 = arith.constant 0 : i32
    %c0_i32_0 = arith.constant 0 : i32
    %c0_i32_1 = arith.constant 0 : i32
    return %arg0, %c0_i32, %c0_i32_0 : i32, i32, i32
  }
}

</mosaic_0001>

<llo_original>
// kernel: tpu_custom_call.1
$region0: #{tpu_custom_call.1}
  #allocation0 [shape = 'u32[]', space=smem, size = 0x4, offset = 0x4, fixed_abs, tag = 'smem constant byte address 0x4 - core index']
  #allocation1 [shape = 'u32[72,128]{1,0:T(1,128)}', space=vmem, size = 0x9000, scoped, tag = 'internal scratch']
  #allocation2 [shape = 'bf16[64,128]{1,0:T(8,128)(2,1)}', space=vmem, size = 0x4000, scoped, tag = 'scratch operand']
  %s0 = inlined_call_operand.hbm [shape: f32[2,64,128], index: 0, kind: input, shape index: {}, may-alias: {0,9}]
  %s1 = inlined_call_operand.vmem [shape: f32[64,1], index: 1, kind: input, shape index: {}]
  %s2 = inlined_call_operand.vmem [shape: f32[64,1], index: 2, kind: input, shape index: {}]
  %s3 = inlined_call_operand.vmem [shape: f32[32,64], index: 3, kind: input, shape index: {}]
  %s4 = inlined_call_operand.vmem [shape: f32[64,32], index: 4, kind: input, shape index: {}]
  %s5 = inlined_call_operand.vmem [shape: bf16[192,64], index: 5, kind: input, shape index: {}]
  %s6 = inlined_call_operand.vmem [shape: f32[192,1], index: 6, kind: input, shape index: {}]
  %s7 = inlined_call_operand.vmem [shape: bf16[64,64], index: 7, kind: input, shape index: {}]
  %s8 = inlined_call_operand.vmem [shape: f32[64,1], index: 8, kind: input, shape index: {}]
  %s9 = inlined_call_operand.hbm [shape: f32[2,64,128], index: 9, kind: output, shape index: {}, may-alias: {0,9}]
  %s10 = sld [smem:[#allocation0]]
  $region73: #{tpu_custom_call.1} parent=0
    _
  %s12 = ssub.s32 1, %s10
  %s13 = scalar_select 0, %s12, %s10
  $region1: #{tpu_custom_call.1} parent=0
    #allocation3 [shape = 'u8[65536]{0}', space=vmem, size = 0x10000, scoped, tag = 'input window, operand 0']
    #allocation4 [shape = 's32[2]{0}', space=sflag, size = 0x8, scoped, tag = 'scoped memory for tpu_custom_call.1']
    #allocation5 [shape = 's32[2]{0}', space=sflag, size = 0x8, scoped, tag = 'scoped memory for tpu_custom_call.1']
    #allocation6 [shape = 'u8[65536]{0}', space=vmem, size = 0x10000, scoped, tag = 'output window, operand 0']
    %14 = vsyncpa [#allocation4], 0
    %s15 = scalar_lea.sflag [#allocation4], 1
    %16 = vsyncpa %s15, 0
    %17 = vsyncpa [#allocation5], 0
    %s18 = scalar_lea.sflag [#allocation5], 1
    %19 = vsyncpa %s18, 0
    loop: start=0, step=1, limit=4
    $region2: #{tpu_custom_call.1} parent=1 // loop_pre_header
      _
    $region3: #{tpu_custom_call.1} parent=1 // loop_header
      %s21 = sphi 0, %s25
      %p22 = scmp.ge.s32.totalorder %s21, 4
      %s31 = sphi 0, %s33
      %s34 = sphi 0, %s31
      %s35 = sphi 0, %s34
      %s51 = sphi 0, %s35
      %s55 = sphi 0, %s55
      %s57 = sphi 0, %s55
      %s58 = sphi 0, %s57
      %s72 = sphi 0, %s58
      %s76 = sphi 0, %s76
      %s78 = sphi 0, %s76
      %s79 = sphi 0, %s78
      %s93 = sphi 0, %s79
      %s97 = sphi 0, %s97
      %s99 = sphi 0, %s97
      %s100 = sphi 0, %s99
      %s114 = sphi 0, %s100
      %s118 = sphi 0, %s118
      %s120 = sphi 0, %s118
      %s121 = sphi 0, %s120
      %s135 = sphi 0, %s121
      %s139 = sphi 0, %s139
      %s141 = sphi 0, %s139
      %s142 = sphi 0, %s141
      %s156 = sphi 0, %s142
      %s160 = sphi 0, %s160
      %s162 = sphi 0, %s160
      %s163 = sphi 0, %s162
      %s177 = sphi 0, %s163
      %s181 = sphi 0, %s181
      %s183 = sphi 0, %s181
      %s184 = sphi 0, %s183
      %s198 = sphi 0, %s184
      %s202 = sphi 0, %s202
      %s204 = sphi 0, %s202
      %s205 = sphi 0, %s204
      %s219 = sphi 0, %s205
      %s225 = sphi 0, %s227
      %s228 = sphi 0, %s225
      %s229 = sphi 0, %s228
      %s245 = sphi 0, %s229
    $region4: #{tpu_custom_call.1} parent=1 // loop_header_branch
      %24 = sbr.rel (%p22) target = $region8
    $region5: #{tpu_custom_call.1} parent=1 // loop_body
      %s26 = ssub.s32 %s21, 1
      %s27 = ssub.s32 %s21, 2
      %s28 = sadd.s32 %s21, 1
      %s29 = ssub.s32 %s21, %s28
      %p30 = scmp.eq.s32.totalorder %s29, 0
      %s32 = sadd.s32 %s31, 1
      %s33 = scalar_select %p30, %s31, %s32
      %p36 = pneg %p30
      %p37 = scmp.eq.s32.totalorder %s21, 1
      %p38 = por %p36, %p37
      %p39 = scmp.ne.s32.totalorder %s31, %s34
      %p40 = scmp.eq.s32.totalorder %s21, 0
      %p41 = por %p39, %p40
      %p42 = scmp.ne.s32.totalorder %s31, %s34
      %p43 = scmp.eq.s32.totalorder %s26, 1
      %p44 = por %p42, %p43
      %p45 = scmp.ne.s32.totalorder %s34, %s35
      %p46 = scmp.eq.s32.totalorder %s26, 0
      %p47 = por %p45, %p46
      %p48 = scmp.ne.s32.totalorder %s34, %s35
      %p49 = scmp.eq.s32.totalorder %s27, 1
      %p50 = por %p48, %p49
      %p52 = scmp.ne.s32.totalorder %s35, %s51
      %p53 = scmp.eq.s32.totalorder %s27, 0
      %p54 = por %p52, %p53
      %s56 = sadd.s32 %s55, 1
      %p59 = scmp.eq.s32.totalorder %s21, 1
      %p60 = scmp.ne.s32.totalorder %s55, %s57
      %p61 = scmp.eq.s32.totalorder %s21, 0
      %p62 = por %p60, %p61
      %p63 = scmp.ne.s32.totalorder %s55, %s57
      %p64 = scmp.eq.s32.totalorder %s26, 1
      %p65 = por %p63, %p64
      %p66 = scmp.ne.s32.totalorder %s57, %s58
      %p67 = scmp.eq.s32.totalorder %s26, 0
      %p68 = por %p66, %p67
      %p69 = scmp.ne.s32.totalorder %s57, %s58
      %p70 = scmp.eq.s32.totalorder %s27, 1
      %p71 = por %p69, %p70
      %p73 = scmp.ne.s32.totalorder %s58, %s72
      %p74 = scmp.eq.s32.totalorder %s27, 0
      %p75 = por %p73, %p74
      %s77 = sadd.s32 %s76, 1
      %p80 = scmp.eq.s32.totalorder %s21, 1
      %p81 = scmp.ne.s32.totalorder %s76, %s78
      %p82 = scmp.eq.s32.totalorder %s21, 0
      %p83 = por %p81, %p82
      %p84 = scmp.ne.s32.totalorder %s76, %s78
      %p85 = scmp.eq.s32.totalorder %s26, 1
      %p86 = por %p84, %p85
      %p87 = scmp.ne.s32.totalorder %s78, %s79
      %p88 = scmp.eq.s32.totalorder %s26, 0
      %p89 = por %p87, %p88
      %p90 = scmp.ne.s32.totalorder %s78, %s79
      %p91 = scmp.eq.s32.totalorder %s27, 1
      %p92 = por %p90, %p91
      %p94 = scmp.ne.s32.totalorder %s79, %s93
      %p95 = scmp.eq.s32.totalorder %s27, 0
      %p96 = por %p94, %p95
      %s98 = sadd.s32 %s97, 1
      %p101 = scmp.eq.s32.totalorder %s21, 1
      %p102 = scmp.ne.s32.totalorder %s97, %s99
      %p103 = scmp.eq.s32.totalorder %s21, 0
      %p104 = por %p102, %p103
      %p105 = scmp.ne.s32.totalorder %s97, %s99
      %p106 = scmp.eq.s32.totalorder %s26, 1
      %p107 = por %p105, %p106
      %p108 = scmp.ne.s32.totalorder %s99, %s100
      %p109 = scmp.eq.s32.totalorder %s26, 0
      %p110 = por %p108, %p109
      %p111 = scmp.ne.s32.totalorder %s99, %s100
      %p112 = scmp.eq.s32.totalorder %s27, 1
      %p113 = por %p111, %p112
      %p115 = scmp.ne.s32.totalorder %s100, %s114
      %p116 = scmp.eq.s32.totalorder %s27, 0
      %p117 = por %p115, %p116
      %s119 = sadd.s32 %s118, 1
      %p122 = scmp.eq.s32.totalorder %s21, 1
      %p123 = scmp.ne.s32.totalorder %s118, %s120
      %p124 = scmp.eq.s32.totalorder %s21, 0
      %p125 = por %p123, %p124
      %p126 = scmp.ne.s32.totalorder %s118, %s120
      %p127 = scmp.eq.s32.totalorder %s26, 1
      %p128 = por %p126, %p127
      %p129 = scmp.ne.s32.totalorder %s120, %s121
      %p130 = scmp.eq.s32.totalorder %s26, 0
      %p131 = por %p129, %p130
      %p132 = scmp.ne.s32.totalorder %s120, %s121
      %p133 = scmp.eq.s32.totalorder %s27, 1
      %p134 = por %p132, %p133
      %p136 = scmp.ne.s32.totalorder %s121, %s135
      %p137 = scmp.eq.s32.totalorder %s27, 0
      %p138 = por %p136, %p137
      %s140 = sadd.s32 %s139, 1
      %p143 = scmp.eq.s32.totalorder %s21, 1
      %p144 = scmp.ne.s32.totalorder %s139, %s141
      %p145 = scmp.eq.s32.totalorder %s21, 0
      %p146 = por %p144, %p145
      %p147 = scmp.ne.s32.totalorder %s139, %s141
      %p148 = scmp.eq.s32.totalorder %s26, 1
      %p149 = por %p147, %p148
      %p150 = scmp.ne.s32.totalorder %s141, %s142
      %p151 = scmp.eq.s32.totalorder %s26, 0
      %p152 = por %p150, %p151
      %p153 = scmp.ne.s32.totalorder %s141, %s142
      %p154 = scmp.eq.s32.totalorder %s27, 1
      %p155 = por %p153, %p154
      %p157 = scmp.ne.s32.totalorder %s142, %s156
      %p158 = scmp.eq.s32.totalorder %s27, 0
      %p159 = por %p157, %p158
      %s161 = sadd.s32 %s160, 1
      %p164 = scmp.eq.s32.totalorder %s21, 1
      %p165 = scmp.ne.s32.totalorder %s160, %s162
      %p166 = scmp.eq.s32.totalorder %s21, 0
      %p167 = por %p165, %p166
      %p168 = scmp.ne.s32.totalorder %s160, %s162
      %p169 = scmp.eq.s32.totalorder %s26, 1
      %p170 = por %p168, %p169
      %p171 = scmp.ne.s32.totalorder %s162, %s163
      %p172 = scmp.eq.s32.totalorder %s26, 0
      %p173 = por %p171, %p172
      %p174 = scmp.ne.s32.totalorder %s162, %s163
      %p175 = scmp.eq.s32.totalorder %s27, 1
      %p176 = por %p174, %p175
      %p178 = scmp.ne.s32.totalorder %s163, %s177
      %p179 = scmp.eq.s32.totalorder %s27, 0
      %p180 = por %p178, %p179
      %s182 = sadd.s32 %s181, 1
      %p185 = scmp.eq.s32.totalorder %s21, 1
      %p186 = scmp.ne.s32.totalorder %s181, %s183
      %p187 = scmp.eq.s32.totalorder %s21, 0
      %p188 = por %p186, %p187
      %p189 = scmp.ne.s32.totalorder %s181, %s183
      %p190 = scmp.eq.s32.totalorder %s26, 1
      %p191 = por %p189, %p190
      %p192 = scmp.ne.s32.totalorder %s183, %s184
      %p193 = scmp.eq.s32.totalorder %s26, 0
      %p194 = por %p192, %p193
      %p195 = scmp.ne.s32.totalorder %s183, %s184
      %p196 = scmp.eq.s32.totalorder %s27, 1
      %p197 = por %p195, %p196
      %p199 = scmp.ne.s32.totalorder %s184, %s198
      %p200 = scmp.eq.s32.totalorder %s27, 0
      %p201 = por %p199, %p200
      %s203 = sadd.s32 %s202, 1
      %p206 = scmp.eq.s32.totalorder %s21, 1
      %p207 = scmp.ne.s32.totalorder %s202, %s204
      %p208 = scmp.eq.s32.totalorder %s21, 0
      %p209 = por %p207, %p208
      %p210 = scmp.ne.s32.totalorder %s202, %s204
      %p211 = scmp.eq.s32.totalorder %s26, 1
      %p212 = por %p210, %p211
      %p213 = scmp.ne.s32.totalorder %s204, %s205
      %p214 = scmp.eq.s32.totalorder %s26, 0
      %p215 = por %p213, %p214
      %p216 = scmp.ne.s32.totalorder %s204, %s205
      %p217 = scmp.eq.s32.totalorder %s27, 1
      %p218 = por %p216, %p217
      %p220 = scmp.ne.s32.totalorder %s205, %s219
      %p221 = scmp.eq.s32.totalorder %s27, 0
      %p222 = por %p220, %p221
      %s223 = ssub.s32 %s21, %s28
      %p224 = scmp.eq.s32.totalorder %s223, 0
      %s226 = sadd.s32 %s225, 1
      %s227 = scalar_select %p224, %s225, %s226
      %p230 = pneg %p224
      %p231 = scmp.eq.s32.totalorder %s21, 1
      %p232 = por %p230, %p231
      %p233 = scmp.ne.s32.totalorder %s225, %s228
      %p234 = scmp.eq.s32.totalorder %s21, 0
      %p235 = por %p233, %p234
      %p236 = scmp.ne.s32.totalorder %s225, %s228
      %p237 = scmp.eq.s32.totalorder %s26, 1
      %p238 = por %p236, %p237
      %p239 = scmp.ne.s32.totalorder %s228, %s229
      %p240 = scmp.eq.s32.totalorder %s26, 0
      %p241 = por %p239, %p240
      %p242 = scmp.ne.s32.totalorder %s228, %s229
      %p243 = scmp.eq.s32.totalorder %s27, 1
      %p244 = por %p242, %p243
      %p246 = scmp.ne.s32.totalorder %s229, %s245
      %p247 = scmp.eq.s32.totalorder %s27, 0
      %p248 = por %p246, %p247
      %p249 = scmp.le.s32.totalorder 1, %s21
      %p250 = scmp.lt.s32.totalorder %s21, 3
      %p251 = pnand %p249, %p250
      %p252 = pneg %p251
      // Predicated region
      $region9: #{tpu_custom_call.1} parent=5 // pred_check
        _
      $region10: #{tpu_custom_call.1} parent=5 // pred_check_branch
        %254 = sbr.rel (%p251) target = $region12
      $region11: #{tpu_custom_call.1} parent=5 // pred_region
        %s255 = ssub.s32 %s21, 1
        // Predicated region
        $region13: #{tpu_custom_call.1} parent=11 // pred_check
          %p256 = pneg %p68
        $region14: #{tpu_custom_call.1} parent=11 // pred_check_branch
          %258 = sbr.rel (%p256) target = $region16
        $region15: #{tpu_custom_call.1} parent=11 // pred_region
          _
        $region16: #{tpu_custom_call.1} parent=11 // pred_fallthru
          _
        // Predicated region
        $region17: #{tpu_custom_call.1} parent=11 // pred_check
          %p259 = pneg %p89
        $region18: #{tpu_custom_call.1} parent=11 // pred_check_branch
          %261 = sbr.rel (%p259) target = $region20
        $region19: #{tpu_custom_call.1} parent=11 // pred_region
          _
        $region20: #{tpu_custom_call.1} parent=11 // pred_fallthru
          _
        // Predicated region
        $region21: #{tpu_custom_call.1} parent=11 // pred_check
          %p262 = pneg %p110
        $region22: #{tpu_custom_call.1} parent=11 // pred_check_branch
          %264 = sbr.rel (%p262) target = $region24
        $region23: #{tpu_custom_call.1} parent=11 // pred_region
          _
        $region24: #{tpu_custom_call.1} parent=11 // pred_fallthru
          _
        // Predicated region
        $region25: #{tpu_custom_call.1} parent=11 // pred_check
          %p265 = pneg %p131
        $region26: #{tpu_custom_call.1} parent=11 // pred_check_branch
          %267 = sbr.rel (%p265) target = $region28
        $region27: #{tpu_custom_call.1} parent=11 // pred_region
          _
        $region28: #{tpu_custom_call.1} parent=11 // pred_fallthru
          _
        // Predicated region
        $region29: #{tpu_custom_call.1} parent=11 // pred_check
          %p268 = pneg %p152
        $region30: #{tpu_custom_call.1} parent=11 // pred_check_branch
          %270 = sbr.rel (%p268) target = $region32
        $region31: #{tpu_custom_call.1} parent=11 // pred_region
          _
        $region32: #{tpu_custom_call.1} parent=11 // pred_fallthru
          _
        // Predicated region
        $region33: #{tpu_custom_call.1} parent=11 // pred_check
          %p271 = pneg %p173
        $region34: #{tpu_custom_call.1} parent=11 // pred_check_branch
          %273 = sbr.rel (%p271) target = $region36
        $region35: #{tpu_custom_call.1} parent=11 // pred_region
          _
        $region36: #{tpu_custom_call.1} parent=11 // pred_fallthru
          _
        // Predicated region
        $region37: #{tpu_custom_call.1} parent=11 // pred_check
          %p274 = pneg %p194
        $region38: #{tpu_custom_call.1} parent=11 // pred_check_branch
          %276 = sbr.rel (%p274) target = $region40
        $region39: #{tpu_custom_call.1} parent=11 // pred_region
          _
        $region40: #{tpu_custom_call.1} parent=11 // pred_fallthru
          _
        // Predicated region
        $region41: #{tpu_custom_call.1} parent=11 // pred_check
          %p277 = pneg %p215
        $region42: #{tpu_custom_call.1} parent=11 // pred_check_branch
          %279 = sbr.rel (%p277) target = $region44
        $region43: #{tpu_custom_call.1} parent=11 // pred_region
          _
        $region44: #{tpu_custom_call.1} parent=11 // pred_fallthru
          _
      $region12: #{tpu_custom_call.1} parent=5 // pred_fallthru
        _
      %p280 = scmp.lt.s32.totalorder %s21, 2
      // Predicated region
      $region45: #{tpu_custom_call.1} parent=5 // pred_check
        %p281 = pneg %p280
      $region46: #{tpu_custom_call.1} parent=5 // pred_check_branch
        %283 = sbr.rel (%p281) target = $region48
      $region47: #{tpu_custom_call.1} parent=5 // pred_region
        // Predicated region
        $region49: #{tpu_custom_call.1} parent=47 // pred_check
          %p284 = pneg %p41
        $region50: #{tpu_custom_call.1} parent=47 // pred_check_branch
          %286 = sbr.rel (%p284) target = $region52
        $region51: #{tpu_custom_call.1} parent=47 // pred_region
          %s287 = sand.u32 %s31, 1
          %s288 = scalar_lea.sflag [#allocation4], %s287
          %s289 = sand.u32 %s31, 1
          %s290 = smul.addr %s289, 64
          %s291 = scalar_lea.vmem [#allocation3], %s290
          %293 = vsyncadd %s288, 0
          %s294 = smul.addr %s21, 8
          %s295 = smul.addr %s294, 8
          %s296 = scalar_lea.hbm %s0, %s295
          %s297 = sshll.u32 %s296, 4
          %s298 = int_to_ptr.hbm [resolvable:$true] %s297
          %s299 = sshll.u32 %s291, 4
          %s300 = int_to_ptr.vmem [resolvable:$true] %s299
          %305 = dma.hbm_to_vmem [thread:$0]  %s298, 1024, %s300, %s288, 128, 128, 8
        $region52: #{tpu_custom_call.1} parent=47 // pred_fallthru
          _
      $region48: #{tpu_custom_call.1} parent=5 // pred_fallthru
        _
      %p306 = scmp.le.s32.totalorder 1, %s21
      %p307 = scmp.lt.s32.totalorder %s21, 3
      %p308 = pnand %p306, %p307
      %p309 = pneg %p308
      // Predicated region
      $region53: #{tpu_custom_call.1} parent=5 // pred_check
        _
      $region54: #{tpu_custom_call.1} parent=5 // pred_check_branch
        %311 = sbr.rel (%p308) target = $region56
      $region55: #{tpu_custom_call.1} parent=5 // pred_region
        %s312 = ssub.s32 %s21, 1
        %s313 = sand.u32 %s34, 1
        %s314 = scalar_lea.sflag [#allocation4], %s313
        %s315 = sand.u32 %s34, 1
        %s316 = smul.addr %s315, 64
        %s317 = scalar_lea.vmem [#allocation3], %s316
        // Predicated region
        $region57: #{tpu_custom_call.1} parent=55 // pred_check
          %p318 = pneg %p47
        $region58: #{tpu_custom_call.1} parent=55 // pred_check_branch
          %320 = sbr.rel (%p318) target = $region60
        $region59: #{tpu_custom_call.1} parent=55 // pred_region
          %322 = dma.done %s314, 1024
        $region60: #{tpu_custom_call.1} parent=55 // pred_fallthru
          _
        %s323 = sand.u32 %s34, 1
        %s324 = scalar_lea.sflag [#allocation4], %s323
        %s325 = sand.u32 %s34, 1
        %s326 = smul.addr %s325, 64
        %s327 = scalar_lea.vmem [#allocation3], %s326
        %p328 = pneg %p47
        %p329 = pneg %p44
        %p330 = pneg %p68
        %p331 = pneg %p65
        %p332 = pneg %p89
        %p333 = pneg %p86
        %p334 = pneg %p110
        %p335 = pneg %p107
        %p336 = pneg %p131
        %p337 = pneg %p128
        %p338 = pneg %p152
        %p339 = pneg %p149
        %p340 = pneg %p173
        %p341 = pneg %p170
        %p342 = pneg %p194
        %p343 = pneg %p191
        %p344 = pneg %p215
        %p345 = pneg %p212
        %p346 = pneg %p241
        %p347 = pneg %p238
        %s348 = sand.u32 %s228, 1
        %s349 = scalar_lea.sflag [#allocation5], %s348
        %s350 = sand.u32 %s228, 1
        %s351 = smul.addr %s350, 64
        %s352 = scalar_lea.vmem [#allocation6], %s351
        %v354 = vld [vmem:[%s317] sm:$0xff]
        %v355 = vld [vmem:[%s317 + $0x8] sm:$0xff]
        %v356 = vld [vmem:[%s317 + $0x10] sm:$0xff]
        %v357 = vld [vmem:[%s317 + $0x18] sm:$0xff]
        %v358 = vld [vmem:[%s317 + $0x20] sm:$0xff]
        %v359 = vld [vmem:[%s317 + $0x28] sm:$0xff]
        %v360 = vld [vmem:[%s317 + $0x30] sm:$0xff]
        %v361 = vld [vmem:[%s317 + $0x38] sm:$0xff]
        %v362 = vlaneseq
        %v363 = vand.u32 %v362, 127
        %vm364 = vcmp.lt.s32.totalorder %v363, 64
        %v365 = vsel %vm364, 0.0, -1e+30
        %366 = vadd.xlane.f32.xlu0 %v354
        %v367 = vpop.xlane.xlu0 %366
        %368 = vadd.xlane.f32.xlu0 %v355
        %v369 = vpop.xlane.xlu0 %368
        %370 = vadd.xlane.f32.xlu0 %v356
        %v371 = vpop.xlane.xlu0 %370
        %372 = vadd.xlane.f32.xlu0 %v357
        %v373 = vpop.xlane.xlu0 %372
        %374 = vadd.xlane.f32.xlu0 %v358
        %v375 = vpop.xlane.xlu0 %374
        %376 = vadd.xlane.f32.xlu0 %v359
        %v377 = vpop.xlane.xlu0 %376
        %378 = vadd.xlane.f32.xlu0 %v360
        %v379 = vpop.xlane.xlu0 %378
        %380 = vadd.xlane.f32.xlu0 %v361
        %v381 = vpop.xlane.xlu0 %380
        %v382 = vld [vmem:[%s3] sm:$0xff]
        %v383 = vld [vmem:[%s3 + $0x8] sm:$0xff]
        %v384 = vld [vmem:[%s3 + $0x10] sm:$0xff]
        %v385 = vld [vmem:[%s3 + $0x18] sm:$0xff]
        %vm386 = vcmask 523264
        %v388 = vsel %vm386, %v382, 0
        %v391 = vsel %vm386, %v383, 0
        %v394 = vsel %vm386, %v384, 0
        %v397 = vsel %vm386, %v385, 0
        %399 = vmatpush.msra.mxu0 0.0
        %400 = vmatpush.msra.mxu0 0.0
        %401 = vmatpush.msra.mxu0 0.0
        %402 = vmatpush.msra.mxu0 0.0
        %403 = vmatpush.msra.mxu0 0.0
        %404 = vmatpush.msra.mxu0 0.0
        %405 = vmatpush.msra.mxu0 0.0
        %406 = vmatpush.msra.mxu0 0.0
        %407 = vmatpush.msra.mxu0 %v381
        %408 = vmatpush.msra.mxu0 %v379
        %409 = vmatpush.msra.mxu0 %v377
        %410 = vmatpush.msra.mxu0 %v375
        %411 = vmatpush.msra.mxu0 %v373
        %412 = vmatpush.msra.mxu0 %v371
        %413 = vmatpush.msra.mxu0 %v369
        %414 = vmatpush.msra.mxu0 %v367
        %415 = vmatmul.f32.gmra.mxu0 %v388
        %v416 = vpop.f32.mrf.mxu0
        %v417 = vadd.f32 0.0, %v416
        %418 = vmatmul.f32.gmra.mxu0 %v391
        %v419 = vpop.f32.mrf.mxu0
        %v420 = vadd.f32 0.0, %v419
        %421 = vmatmul.f32.gmra.mxu0 %v394
        %v422 = vpop.f32.mrf.mxu0
        %v423 = vadd.f32 0.0, %v422
        %424 = vmatmul.f32.gmra.mxu0 %v397
        %v425 = vpop.f32.mrf.mxu0
        %v426 = vadd.f32 0.0, %v425
        %427 = vdwg.mxu0
        %v428 = vld [vmem:[%s4] sm:$0xff]
        %v429 = vld [vmem:[%s4 + $0x8] sm:$0xff]
        %v430 = vld [vmem:[%s4 + $0x10] sm:$0xff]
        %v431 = vld [vmem:[%s4 + $0x18] sm:$0xff]
        %v432 = vld [vmem:[%s4 + $0x20] sm:$0xff]
        %v433 = vld [vmem:[%s4 + $0x28] sm:$0xff]
        %v434 = vld [vmem:[%s4 + $0x30] sm:$0xff]
        %v435 = vld [vmem:[%s4 + $0x38] sm:$0xff]
        %vm436 = vcmask 261120
        %v438 = vsel %vm436, %v428, 0
        %v441 = vsel %vm436, %v429, 0
        %v444 = vsel %vm436, %v430, 0
        %v447 = vsel %vm436, %v431, 0
        %v450 = vsel %vm436, %v432, 0
        %v453 = vsel %vm436, %v433, 0
        %v456 = vsel %vm436, %v434, 0
        %v459 = vsel %vm436, %v435, 0
        %461 = vmatpush.msra.mxu0 0.0
        %462 = vmatpush.msra.mxu0 0.0
        %463 = vmatpush.msra.mxu0 0.0
        %464 = vmatpush.msra.mxu0 0.0
        %465 = vmatpush.msra.mxu0 0.0
        %466 = vmatpush.msra.mxu0 0.0
        %467 = vmatpush.msra.mxu0 0.0
        %468 = vmatpush.msra.mxu0 0.0
        %469 = vmatpush.msra.mxu0 0.0
        %470 = vmatpush.msra.mxu0 0.0
        %471 = vmatpush.msra.mxu0 0.0
        %472 = vmatpush.msra.mxu0 0.0
        %473 = vmatpush.msra.mxu0 %v426
        %474 = vmatpush.msra.mxu0 %v423
        %475 = vmatpush.msra.mxu0 %v420
        %476 = vmatpush.msra.mxu0 %v417
        %477 = vmatmul.f32.gmra.mxu0 %v438
        %v478 = vpop.f32.mrf.mxu0
        %v479 = vadd.f32 0.0, %v478
        %480 = vmatmul.f32.gmra.mxu0 %v441
        %v481 = vpop.f32.mrf.mxu0
        %v482 = vadd.f32 0.0, %v481
        %483 = vmatmul.f32.gmra.mxu0 %v444
        %v484 = vpop.f32.mrf.mxu0
        %v485 = vadd.f32 0.0, %v484
        %486 = vmatmul.f32.gmra.mxu0 %v447
        %v487 = vpop.f32.mrf.mxu0
        %v488 = vadd.f32 0.0, %v487
        %489 = vmatmul.f32.gmra.mxu0 %v450
        %v490 = vpop.f32.mrf.mxu0
        %v491 = vadd.f32 0.0, %v490
        %492 = vmatmul.f32.gmra.mxu0 %v453
        %v493 = vpop.f32.mrf.mxu0
        %v494 = vadd.f32 0.0, %v493
        %495 = vmatmul.f32.gmra.mxu0 %v456
        %v496 = vpop.f32.mrf.mxu0
        %v497 = vadd.f32 0.0, %v496
        %498 = vmatmul.f32.gmra.mxu0 %v459
        %v499 = vpop.f32.mrf.mxu0
        %v500 = vadd.f32 0.0, %v499
        %501 = vdwg.mxu0
        %503 = vset.pattern.permute.xlu0 0
        %504 = vperm.xlu0 %503, %v479
        %v505 = vpop.permute.xlu0 %504
        %508 = vset.pattern.permute.xlu0 0
        %509 = vperm.xlu0 %508, %v482
        %v510 = vpop.permute.xlu0 %509
        %513 = vset.pattern.permute.xlu0 0
        %514 = vperm.xlu0 %513, %v485
        %v515 = vpop.permute.xlu0 %514
        %518 = vset.pattern.permute.xlu0 0
        %519 = vperm.xlu0 %518, %v488
        %v520 = vpop.permute.xlu0 %519
        %523 = vset.pattern.permute.xlu0 0
        %524 = vperm.xlu0 %523, %v491
        %v525 = vpop.permute.xlu0 %524
        %528 = vset.pattern.permute.xlu0 0
        %529 = vperm.xlu0 %528, %v494
        %v530 = vpop.permute.xlu0 %529
        %533 = vset.pattern.permute.xlu0 0
        %534 = vperm.xlu0 %533, %v497
        %v535 = vpop.permute.xlu0 %534
        %538 = vset.pattern.permute.xlu0 0
        %539 = vperm.xlu0 %538, %v500
        %v540 = vpop.permute.xlu0 %539
        %v542 = vsub.f32 %v354, %v505
        %v543 = vsub.f32 %v355, %v510
        %v544 = vsub.f32 %v356, %v515
        %v545 = vsub.f32 %v357, %v520
        %v546 = vsub.f32 %v358, %v525
        %v547 = vsub.f32 %v359, %v530
        %v548 = vsub.f32 %v360, %v535
        %v549 = vsub.f32 %v361, %v540
        %v550 = vmul.f32 %v542, %v542
        %v551 = vmul.f32 %v543, %v543
        %v552 = vmul.f32 %v544, %v544
        %v553 = vmul.f32 %v545, %v545
        %v554 = vmul.f32 %v546, %v546
        %v555 = vmul.f32 %v547, %v547
        %v556 = vmul.f32 %v548, %v548
        %v557 = vmul.f32 %v549, %v549
        %v558 = vsel %vm364, 1, 0
        %vm559 = vcmp.eq.s32.totalorder %v558, 1
        %v560 = vsel %vm559, %v550, 0.0
        %v561 = vsel %vm559, %v551, 0.0
        %v562 = vsel %vm559, %v552, 0.0
        %v563 = vsel %vm559, %v553, 0.0
        %v564 = vsel %vm559, %v554, 0.0
        %v565 = vsel %vm559, %v555, 0.0
        %v566 = vsel %vm559, %v556, 0.0
        %v567 = vsel %vm559, %v557, 0.0
        %568 = vadd.xlane.f32.xlu0 %v560
        %v569 = vpop.xlane.xlu0 %568
        %570 = vadd.xlane.f32.xlu0 %v561
        %v571 = vpop.xlane.xlu0 %570
        %572 = vadd.xlane.f32.xlu0 %v562
        %v573 = vpop.xlane.xlu0 %572
        %574 = vadd.xlane.f32.xlu0 %v563
        %v575 = vpop.xlane.xlu0 %574
        %576 = vadd.xlane.f32.xlu0 %v564
        %v577 = vpop.xlane.xlu0 %576
        %578 = vadd.xlane.f32.xlu0 %v565
        %v579 = vpop.xlane.xlu0 %578
        %580 = vadd.xlane.f32.xlu0 %v566
        %v581 = vpop.xlane.xlu0 %580
        %582 = vadd.xlane.f32.xlu0 %v567
        %v583 = vpop.xlane.xlu0 %582
        %584 = vmatpush.msra.mxu0 0.0
        %585 = vmatpush.msra.mxu0 0.0
        %586 = vmatpush.msra.mxu0 0.0
        %587 = vmatpush.msra.mxu0 0.0
        %588 = vmatpush.msra.mxu0 0.0
        %589 = vmatpush.msra.mxu0 0.0
        %590 = vmatpush.msra.mxu0 0.0
        %591 = vmatpush.msra.mxu0 0.0
        %592 = vmatpush.msra.mxu0 %v583
        %593 = vmatpush.msra.mxu0 %v581
        %594 = vmatpush.msra.mxu0 %v579
        %595 = vmatpush.msra.mxu0 %v577
        %596 = vmatpush.msra.mxu0 %v575
        %597 = vmatpush.msra.mxu0 %v573
        %598 = vmatpush.msra.mxu0 %v571
        %599 = vmatpush.msra.mxu0 %v569
        %600 = vmatmul.f32.gmra.mxu0 %v388
        %v601 = vpop.f32.mrf.mxu0
        %v602 = vadd.f32 0.0, %v601
        %603 = vmatmul.f32.gmra.mxu0 %v391
        %v604 = vpop.f32.mrf.mxu0
        %v605 = vadd.f32 0.0, %v604
        %606 = vmatmul.f32.gmra.mxu0 %v394
        %v607 = vpop.f32.mrf.mxu0
        %v608 = vadd.f32 0.0, %v607
        %609 = vmatmul.f32.gmra.mxu0 %v397
        %v610 = vpop.f32.mrf.mxu0
        %v611 = vadd.f32 0.0, %v610
        %612 = vdwg.mxu0
        %613 = vmatpush.msra.mxu0 0.0
        %614 = vmatpush.msra.mxu0 0.0
        %615 = vmatpush.msra.mxu0 0.0
        %616 = vmatpush.msra.mxu0 0.0
        %617 = vmatpush.msra.mxu0 0.0
        %618 = vmatpush.msra.mxu0 0.0
        %619 = vmatpush.msra.mxu0 0.0
        %620 = vmatpush.msra.mxu0 0.0
        %621 = vmatpush.msra.mxu0 0.0
        %622 = vmatpush.msra.mxu0 0.0
        %623 = vmatpush.msra.mxu0 0.0
        %624 = vmatpush.msra.mxu0 0.0
        %625 = vmatpush.msra.mxu0 %v611
        %626 = vmatpush.msra.mxu0 %v608
        %627 = vmatpush.msra.mxu0 %v605
        %628 = vmatpush.msra.mxu0 %v602
        %629 = vmatmul.f32.gmra.mxu0 %v438
        %v630 = vpop.f32.mrf.mxu0
        %v631 = vadd.f32 1e-05, %v630
        %632 = vmatmul.f32.gmra.mxu0 %v441
        %v633 = vpop.f32.mrf.mxu0
        %v634 = vadd.f32 1e-05, %v633
        %635 = vmatmul.f32.gmra.mxu0 %v444
        %v636 = vpop.f32.mrf.mxu0
        %v637 = vadd.f32 1e-05, %v636
        %638 = vmatmul.f32.gmra.mxu0 %v447
        %v639 = vpop.f32.mrf.mxu0
        %v640 = vadd.f32 1e-05, %v639
        %641 = vmatmul.f32.gmra.mxu0 %v450
        %v642 = vpop.f32.mrf.mxu0
        %v643 = vadd.f32 1e-05, %v642
        %644 = vmatmul.f32.gmra.mxu0 %v453
        %v645 = vpop.f32.mrf.mxu0
        %v646 = vadd.f32 1e-05, %v645
        %647 = vmatmul.f32.gmra.mxu0 %v456
        %v648 = vpop.f32.mrf.mxu0
        %v649 = vadd.f32 1e-05, %v648
        %650 = vmatmul.f32.gmra.mxu0 %v459
        %v651 = vpop.f32.mrf.mxu0
        %v652 = vadd.f32 1e-05, %v651
        %653 = vdwg.mxu0
        %v654 = vrsqrt.pop %v631
        %v655 = vmul.f32 %v654, %v631
        %v656 = vmul.f32 %v655, %v654
        %v657 = vmul.f32 0.5, %v656
        %v658 = vsub.f32 1.5, %v657
        %v659 = vmul.f32 %v654, %v658
        %vm660 = vweird.f32 %v631
        %vm661 = vweird.f32 %v654
        %vm662 = vmor %vm660, %vm661
        %v663 = vsel %vm662, %v654, %v659
        %v664 = vrsqrt.pop %v634
        %v665 = vmul.f32 %v664, %v634
        %v666 = vmul.f32 %v665, %v664
        %v667 = vmul.f32 0.5, %v666
        %v668 = vsub.f32 1.5, %v667
        %v669 = vmul.f32 %v664, %v668
        %vm670 = vweird.f32 %v634
        %vm671 = vweird.f32 %v664
        %vm672 = vmor %vm670, %vm671
        %v673 = vsel %vm672, %v664, %v669
        %v674 = vrsqrt.pop %v637
        %v675 = vmul.f32 %v674, %v637
        %v676 = vmul.f32 %v675, %v674
        %v677 = vmul.f32 0.5, %v676
        %v678 = vsub.f32 1.5, %v677
        %v679 = vmul.f32 %v674, %v678
        %vm680 = vweird.f32 %v637
        %vm681 = vweird.f32 %v674
        %vm682 = vmor %vm680, %vm681
        %v683 = vsel %vm682, %v674, %v679
        %v684 = vrsqrt.pop %v640
        %v685 = vmul.f32 %v684, %v640
        %v686 = vmul.f32 %v685, %v684
        %v687 = vmul.f32 0.5, %v686
        %v688 = vsub.f32 1.5, %v687
        %v689 = vmul.f32 %v684, %v688
        %vm690 = vweird.f32 %v640
        %vm691 = vweird.f32 %v684
        %vm692 = vmor %vm690, %vm691
        %v693 = vsel %vm692, %v684, %v689
        %v694 = vrsqrt.pop %v643
        %v695 = vmul.f32 %v694, %v643
        %v696 = vmul.f32 %v695, %v694
        %v697 = vmul.f32 0.5, %v696
        %v698 = vsub.f32 1.5, %v697
        %v699 = vmul.f32 %v694, %v698
        %vm700 = vweird.f32 %v643
        %vm701 = vweird.f32 %v694
        %vm702 = vmor %vm700, %vm701
        %v703 = vsel %vm702, %v694, %v699
        %v704 = vrsqrt.pop %v646
        %v705 = vmul.f32 %v704, %v646
        %v706 = vmul.f32 %v705, %v704
        %v707 = vmul.f32 0.5, %v706
        %v708 = vsub.f32 1.5, %v707
        %v709 = vmul.f32 %v704, %v708
        %vm710 = vweird.f32 %v646
        %vm711 = vweird.f32 %v704
        %vm712 = vmor %vm710, %vm711
        %v713 = vsel %vm712, %v704, %v709
        %v714 = vrsqrt.pop %v649
        %v715 = vmul.f32 %v714, %v649
        %v716 = vmul.f32 %v715, %v714
        %v717 = vmul.f32 0.5, %v716
        %v718 = vsub.f32 1.5, %v717
        %v719 = vmul.f32 %v714, %v718
        %vm720 = vweird.f32 %v649
        %vm721 = vweird.f32 %v714
        %vm722 = vmor %vm720, %vm721
        %v723 = vsel %vm722, %v714, %v719
        %v724 = vrsqrt.pop %v652
        %v725 = vmul.f32 %v724, %v652
        %v726 = vmul.f32 %v725, %v724
        %v727 = vmul.f32 0.5, %v726
        %v728 = vsub.f32 1.5, %v727
        %v729 = vmul.f32 %v724, %v728
        %vm730 = vweird.f32 %v652
        %vm731 = vweird.f32 %v724
        %vm732 = vmor %vm730, %vm731
        %v733 = vsel %vm732, %v724, %v729
        %v734 = vld [vmem:[%s1] sm:$0xff]
        %v735 = vld [vmem:[%s1 + $0x8] sm:$0xff]
        %v736 = vld [vmem:[%s1 + $0x10] sm:$0xff]
        %v737 = vld [vmem:[%s1 + $0x18] sm:$0xff]
        %v738 = vld [vmem:[%s1 + $0x20] sm:$0xff]
        %v739 = vld [vmem:[%s1 + $0x28] sm:$0xff]
        %v740 = vld [vmem:[%s1 + $0x30] sm:$0xff]
        %v741 = vld [vmem:[%s1 + $0x38] sm:$0xff]
        %v742 = vmul.f32 %v663, %v734
        %v743 = vmul.f32 %v673, %v735
        %v744 = vmul.f32 %v683, %v736
        %v745 = vmul.f32 %v693, %v737
        %v746 = vmul.f32 %v703, %v738
        %v747 = vmul.f32 %v713, %v739
        %v748 = vmul.f32 %v723, %v740
        %v749 = vmul.f32 %v733, %v741
        %751 = vset.pattern.permute.xlu0 0
        %752 = vperm.xlu0 %751, %v742
        %v753 = vpop.permute.xlu0 %752
        %756 = vset.pattern.permute.xlu0 0
        %757 = vperm.xlu0 %756, %v743
        %v758 = vpop.permute.xlu0 %757
        %761 = vset.pattern.permute.xlu0 0
        %762 = vperm.xlu0 %761, %v744
        %v763 = vpop.permute.xlu0 %762
        %766 = vset.pattern.permute.xlu0 0
        %767 = vperm.xlu0 %766, %v745
        %v768 = vpop.permute.xlu0 %767
        %771 = vset.pattern.permute.xlu0 0
        %772 = vperm.xlu0 %771, %v746
        %v773 = vpop.permute.xlu0 %772
        %776 = vset.pattern.permute.xlu0 0
        %777 = vperm.xlu0 %776, %v747
        %v778 = vpop.permute.xlu0 %777
        %781 = vset.pattern.permute.xlu0 0
        %782 = vperm.xlu0 %781, %v748
        %v783 = vpop.permute.xlu0 %782
        %786 = vset.pattern.permute.xlu0 0
        %787 = vperm.xlu0 %786, %v749
        %v788 = vpop.permute.xlu0 %787
        %v790 = vmul.f32 %v542, %v753
        %v791 = vmul.f32 %v543, %v758
        %v792 = vmul.f32 %v544, %v763
        %v793 = vmul.f32 %v545, %v768
        %v794 = vmul.f32 %v546, %v773
        %v795 = vmul.f32 %v547, %v778
        %v796 = vmul.f32 %v548, %v783
        %v797 = vmul.f32 %v549, %v788
        %v798 = vld [vmem:[%s2] sm:$0xff]
        %v799 = vld [vmem:[%s2 + $0x8] sm:$0xff]
        %v800 = vld [vmem:[%s2 + $0x10] sm:$0xff]
        %v801 = vld [vmem:[%s2 + $0x18] sm:$0xff]
        %v802 = vld [vmem:[%s2 + $0x20] sm:$0xff]
        %v803 = vld [vmem:[%s2 + $0x28] sm:$0xff]
        %v804 = vld [vmem:[%s2 + $0x30] sm:$0xff]
        %v805 = vld [vmem:[%s2 + $0x38] sm:$0xff]
        %807 = vset.pattern.permute.xlu0 0
        %808 = vperm.xlu0 %807, %v798
        %v809 = vpop.permute.xlu0 %808
        %812 = vset.pattern.permute.xlu0 0
        %813 = vperm.xlu0 %812, %v799
        %v814 = vpop.permute.xlu0 %813
        %817 = vset.pattern.permute.xlu0 0
        %818 = vperm.xlu0 %817, %v800
        %v819 = vpop.permute.xlu0 %818
        %822 = vset.pattern.permute.xlu0 0
        %823 = vperm.xlu0 %822, %v801
        %v824 = vpop.permute.xlu0 %823
        %827 = vset.pattern.permute.xlu0 0
        %828 = vperm.xlu0 %827, %v802
        %v829 = vpop.permute.xlu0 %828
        %832 = vset.pattern.permute.xlu0 0
        %833 = vperm.xlu0 %832, %v803
        %v834 = vpop.permute.xlu0 %833
        %837 = vset.pattern.permute.xlu0 0
        %838 = vperm.xlu0 %837, %v804
        %v839 = vpop.permute.xlu0 %838
        %842 = vset.pattern.permute.xlu0 0
        %843 = vperm.xlu0 %842, %v805
        %v844 = vpop.permute.xlu0 %843
        %v846 = vadd.f32 %v790, %v809
        %v847 = vadd.f32 %v791, %v814
        %v848 = vadd.f32 %v792, %v819
        %v849 = vadd.f32 %v793, %v824
        %v850 = vadd.f32 %v794, %v829
        %v851 = vadd.f32 %v795, %v834
        %v852 = vadd.f32 %v796, %v839
        %v853 = vadd.f32 %v797, %v844
        %v854 = vpack.c.bf16 %v847, %v846
        %v855 = vpack.c.bf16 %v849, %v848
        %v856 = vpack.c.bf16 %v851, %v850
        %v857 = vpack.c.bf16 %v853, %v852
        %v858 = vld [vmem:[%s5] sm:$0xf]
        %v859 = vld [vmem:[%s5 + $0x4] sm:$0xf]
        %v860 = vld [vmem:[%s5 + $0x8] sm:$0xf]
        %v861 = vld [vmem:[%s5 + $0xc] sm:$0xf]
        %v862 = vld [vmem:[%s5 + $0x10] sm:$0xf]
        %v863 = vld [vmem:[%s5 + $0x14] sm:$0xf]
        %v864 = vld [vmem:[%s5 + $0x18] sm:$0xf]
        %v865 = vld [vmem:[%s5 + $0x1c] sm:$0xf]
        %v866 = vld [vmem:[%s5 + $0x20] sm:$0xf]
        %v867 = vld [vmem:[%s5 + $0x24] sm:$0xf]
        %v868 = vld [vmem:[%s5 + $0x28] sm:$0xf]
        %v869 = vld [vmem:[%s5 + $0x2c] sm:$0xf]
        %v870 = vld [vmem:[%s5 + $0x30] sm:$0xf]
        %v871 = vld [vmem:[%s5 + $0x34] sm:$0xf]
        %v872 = vld [vmem:[%s5 + $0x38] sm:$0xf]
        %v873 = vld [vmem:[%s5 + $0x3c] sm:$0xf]
        %v874 = vld [vmem:[%s5 + $0x40] sm:$0xf]
        %v875 = vld [vmem:[%s5 + $0x44] sm:$0xf]
        %v876 = vld [vmem:[%s5 + $0x48] sm:$0xf]
        %v877 = vld [vmem:[%s5 + $0x4c] sm:$0xf]
        %v878 = vld [vmem:[%s5 + $0x50] sm:$0xf]
        %v879 = vld [vmem:[%s5 + $0x54] sm:$0xf]
        %v880 = vld [vmem:[%s5 + $0x58] sm:$0xf]
        %v881 = vld [vmem:[%s5 + $0x5c] sm:$0xf]
        %v882 = vld [vmem:[%s6] sm:$0xff]
        %v883 = vld [vmem:[%s6 + $0x8] sm:$0xff]
        %v884 = vld [vmem:[%s6 + $0x10] sm:$0xff]
        %v885 = vld [vmem:[%s6 + $0x18] sm:$0xff]
        %v886 = vld [vmem:[%s6 + $0x20] sm:$0xff]
        %v887 = vld [vmem:[%s6 + $0x28] sm:$0xff]
        %v888 = vld [vmem:[%s6 + $0x30] sm:$0xff]
        %v889 = vld [vmem:[%s6 + $0x38] sm:$0xff]
        %v890 = vld [vmem:[%s6 + $0x40] sm:$0xff]
        %v891 = vld [vmem:[%s6 + $0x48] sm:$0xff]
        %v892 = vld [vmem:[%s6 + $0x50] sm:$0xff]
        %v893 = vld [vmem:[%s6 + $0x58] sm:$0xff]
        %v894 = vld [vmem:[%s6 + $0x60] sm:$0xff]
        %v895 = vld [vmem:[%s6 + $0x68] sm:$0xff]
        %v896 = vld [vmem:[%s6 + $0x70] sm:$0xff]
        %v897 = vld [vmem:[%s6 + $0x78] sm:$0xff]
        %v898 = vld [vmem:[%s6 + $0x80] sm:$0xff]
        %v899 = vld [vmem:[%s6 + $0x88] sm:$0xff]
        %v900 = vld [vmem:[%s6 + $0x90] sm:$0xff]
        %v901 = vld [vmem:[%s6 + $0x98] sm:$0xff]
        %v902 = vld [vmem:[%s6 + $0xa0] sm:$0xff]
        %v903 = vld [vmem:[%s6 + $0xa8] sm:$0xff]
        %v904 = vld [vmem:[%s6 + $0xb0] sm:$0xff]
        %v905 = vld [vmem:[%s6 + $0xb8] sm:$0xff]
        %907 = vset.pattern.permute.xlu0 0
        %908 = vperm.xlu0 %907, %v882
        %v909 = vpop.permute.xlu0 %908
        %912 = vset.pattern.permute.xlu0 0
        %913 = vperm.xlu0 %912, %v883
        %v914 = vpop.permute.xlu0 %913
        %917 = vset.pattern.permute.xlu0 0
        %918 = vperm.xlu0 %917, %v884
        %v919 = vpop.permute.xlu0 %918
        %922 = vset.pattern.permute.xlu0 0
        %923 = vperm.xlu0 %922, %v885
        %v924 = vpop.permute.xlu0 %923
        %927 = vset.pattern.permute.xlu0 0
        %928 = vperm.xlu0 %927, %v886
        %v929 = vpop.permute.xlu0 %928
        %932 = vset.pattern.permute.xlu0 0
        %933 = vperm.xlu0 %932, %v887
        %v934 = vpop.permute.xlu0 %933
        %937 = vset.pattern.permute.xlu0 0
        %938 = vperm.xlu0 %937, %v888
        %v939 = vpop.permute.xlu0 %938
        %942 = vset.pattern.permute.xlu0 0
        %943 = vperm.xlu0 %942, %v889
        %v944 = vpop.permute.xlu0 %943
        %947 = vset.pattern.permute.xlu0 0
        %948 = vperm.xlu0 %947, %v890
        %v949 = vpop.permute.xlu0 %948
        %952 = vset.pattern.permute.xlu0 0
        %953 = vperm.xlu0 %952, %v891
        %v954 = vpop.permute.xlu0 %953
        %957 = vset.pattern.permute.xlu0 0
        %958 = vperm.xlu0 %957, %v892
        %v959 = vpop.permute.xlu0 %958
        %962 = vset.pattern.permute.xlu0 0
        %963 = vperm.xlu0 %962, %v893
        %v964 = vpop.permute.xlu0 %963
        %967 = vset.pattern.permute.xlu0 0
        %968 = vperm.xlu0 %967, %v894
        %v969 = vpop.permute.xlu0 %968
        %972 = vset.pattern.permute.xlu0 0
        %973 = vperm.xlu0 %972, %v895
        %v974 = vpop.permute.xlu0 %973
        %977 = vset.pattern.permute.xlu0 0
        %978 = vperm.xlu0 %977, %v896
        %v979 = vpop.permute.xlu0 %978
        %982 = vset.pattern.permute.xlu0 0
        %983 = vperm.xlu0 %982, %v897
        %v984 = vpop.permute.xlu0 %983
        %987 = vset.pattern.permute.xlu0 0
        %988 = vperm.xlu0 %987, %v898
        %v989 = vpop.permute.xlu0 %988
        %992 = vset.pattern.permute.xlu0 0
        %993 = vperm.xlu0 %992, %v899
        %v994 = vpop.permute.xlu0 %993
        %997 = vset.pattern.permute.xlu0 0
        %998 = vperm.xlu0 %997, %v900
        %v999 = vpop.permute.xlu0 %998
        %1002 = vset.pattern.permute.xlu0 0
        %1003 = vperm.xlu0 %1002, %v901
        %v1004 = vpop.permute.xlu0 %1003
        %1007 = vset.pattern.permute.xlu0 0
        %1008 = vperm.xlu0 %1007, %v902
        %v1009 = vpop.permute.xlu0 %1008
        %1012 = vset.pattern.permute.xlu0 0
        %1013 = vperm.xlu0 %1012, %v903
        %v1014 = vpop.permute.xlu0 %1013
        %1017 = vset.pattern.permute.xlu0 0
        %1018 = vperm.xlu0 %1017, %v904
        %v1019 = vpop.permute.xlu0 %1018
        %1022 = vset.pattern.permute.xlu0 0
        %1023 = vperm.xlu0 %1022, %v905
        %v1024 = vpop.permute.xlu0 %1023
        %v1050 = vunpack.c.l.b16 %v858
        %v1051 = vunpack.c.l.b16 %v859
        %v1052 = vunpack.c.l.b16 %v860
        %v1053 = vunpack.c.l.b16 %v861
        %v1054 = vunpack.c.l.b16 %v862
        %v1055 = vunpack.c.l.b16 %v863
        %v1056 = vunpack.c.l.b16 %v864
        %v1057 = vunpack.c.l.b16 %v865
        %v1058 = vunpack.c.l.b16 %v866
        %v1059 = vunpack.c.l.b16 %v867
        %v1060 = vunpack.c.l.b16 %v868
        %v1061 = vunpack.c.l.b16 %v869
        %v1062 = vunpack.c.l.b16 %v870
        %v1063 = vunpack.c.l.b16 %v871
        %v1064 = vunpack.c.l.b16 %v872
        %v1065 = vunpack.c.l.b16 %v873
        %v1066 = vunpack.c.l.b16 %v874
        %v1067 = vunpack.c.l.b16 %v875
        %v1068 = vunpack.c.l.b16 %v876
        %v1069 = vunpack.c.l.b16 %v877
        %v1070 = vunpack.c.l.b16 %v878
        %v1071 = vunpack.c.l.b16 %v879
        %v1072 = vunpack.c.l.b16 %v880
        %v1073 = vunpack.c.l.b16 %v881
        %v1074 = vpack.c.b16 %v1051, %v1050
        %v1075 = vpack.c.b16 %v1053, %v1052
        %v1076 = vpack.c.b16 %v1055, %v1054
        %v1077 = vpack.c.b16 %v1057, %v1056
        %v1078 = vpack.c.b16 %v1059, %v1058
        %v1079 = vpack.c.b16 %v1061, %v1060
        %v1080 = vpack.c.b16 %v1063, %v1062
        %v1081 = vpack.c.b16 %v1065, %v1064
        %v1082 = vpack.c.b16 %v1067, %v1066
        %v1083 = vpack.c.b16 %v1069, %v1068
        %v1084 = vpack.c.b16 %v1071, %v1070
        %v1085 = vpack.c.b16 %v1073, %v1072
        %v1087 = vsel %vm386, %v1074, 0
        %v1090 = vsel %vm386, %v1075, 0
        %v1093 = vsel %vm386, %v1076, 0
        %v1096 = vsel %vm386, %v1077, 0
        %v1099 = vsel %vm386, %v1078, 0
        %v1102 = vsel %vm386, %v1079, 0
        %v1105 = vsel %vm386, %v1080, 0
        %v1108 = vsel %vm386, %v1081, 0
        %v1111 = vsel %vm386, %v1082, 0
        %v1114 = vsel %vm386, %v1083, 0
        %v1117 = vsel %vm386, %v1084, 0
        %v1120 = vsel %vm386, %v1085, 0
        %1122 = vmatpush.bf16.msra.mxu0 0
        %1123 = vmatpush.bf16.msra.mxu0 0
        %1124 = vmatpush.bf16.msra.mxu0 0
        %1125 = vmatpush.bf16.msra.mxu0 0
        %1126 = vmatpush.bf16.msra.mxu0 %v857
        %1127 = vmatpush.bf16.msra.mxu0 %v856
        %1128 = vmatpush.bf16.msra.mxu0 %v855
        %1129 = vmatpush.bf16.msra.mxu0 %v854
        %1130 = vmatmul.bf16.gmra.mxu0 %v1087
        %v1131 = vpop.f32.mrf.mxu0
        %v1132 = vadd.f32 %v909, %v1131
        %v1133 = vpop.f32.mrf.mxu0
        %v1134 = vadd.f32 %v914, %v1133
        %1135 = vmatmul.bf16.gmra.mxu0 %v1090
        %v1136 = vpop.f32.mrf.mxu0
        %v1137 = vadd.f32 %v919, %v1136
        %v1138 = vpop.f32.mrf.mxu0
        %v1139 = vadd.f32 %v924, %v1138
        %1140 = vmatmul.bf16.gmra.mxu0 %v1093
        %v1141 = vpop.f32.mrf.mxu0
        %v1142 = vadd.f32 %v929, %v1141
        %v1143 = vpop.f32.mrf.mxu0
        %v1144 = vadd.f32 %v934, %v1143
        %1145 = vmatmul.bf16.gmra.mxu0 %v1096
        %v1146 = vpop.f32.mrf.mxu0
        %v1147 = vadd.f32 %v939, %v1146
        %v1148 = vpop.f32.mrf.mxu0
        %v1149 = vadd.f32 %v944, %v1148
        %1150 = vmatmul.bf16.gmra.mxu0 %v1099
        %v1151 = vpop.f32.mrf.mxu0
        %v1152 = vadd.f32 %v949, %v1151
        %v1153 = vpop.f32.mrf.mxu0
        %v1154 = vadd.f32 %v954, %v1153
        %1155 = vmatmul.bf16.gmra.mxu0 %v1102
        %v1156 = vpop.f32.mrf.mxu0
        %v1157 = vadd.f32 %v959, %v1156
        %v1158 = vpop.f32.mrf.mxu0
        %v1159 = vadd.f32 %v964, %v1158
        %1160 = vmatmul.bf16.gmra.mxu0 %v1105
        %v1161 = vpop.f32.mrf.mxu0
        %v1162 = vadd.f32 %v969, %v1161
        %v1163 = vpop.f32.mrf.mxu0
        %v1164 = vadd.f32 %v974, %v1163
        %1165 = vmatmul.bf16.gmra.mxu0 %v1108
        %v1166 = vpop.f32.mrf.mxu0
        %v1167 = vadd.f32 %v979, %v1166
        %v1168 = vpop.f32.mrf.mxu0
        %v1169 = vadd.f32 %v984, %v1168
        %1170 = vmatmul.bf16.gmra.mxu0 %v1111
        %v1171 = vpop.f32.mrf.mxu0
        %v1172 = vadd.f32 %v989, %v1171
        %v1173 = vpop.f32.mrf.mxu0
        %v1174 = vadd.f32 %v994, %v1173
        %1175 = vmatmul.bf16.gmra.mxu0 %v1114
        %v1176 = vpop.f32.mrf.mxu0
        %v1177 = vadd.f32 %v999, %v1176
        %v1178 = vpop.f32.mrf.mxu0
        %v1179 = vadd.f32 %v1004, %v1178
        %1180 = vmatmul.bf16.gmra.mxu0 %v1117
        %v1181 = vpop.f32.mrf.mxu0
        %v1182 = vadd.f32 %v1009, %v1181
        %v1183 = vpop.f32.mrf.mxu0
        %v1184 = vadd.f32 %v1014, %v1183
        %1185 = vmatmul.bf16.gmra.mxu0 %v1120
        %v1186 = vpop.f32.mrf.mxu0
        %v1187 = vadd.f32 %v1019, %v1186
        %v1188 = vpop.f32.mrf.mxu0
        %v1189 = vadd.f32 %v1024, %v1188
        %1190 = vdwg.mxu0
        %v1191 = vpack.c.bf16 %v1132, %v1132
        %v1192 = vpack.c.bf16 %v1134, %v1134
        %v1193 = vpack.c.bf16 %v1137, %v1137
        %v1194 = vpack.c.bf16 %v1139, %v1139
        %v1195 = vpack.c.bf16 %v1142, %v1142
        %v1196 = vpack.c.bf16 %v1144, %v1144
        %v1197 = vpack.c.bf16 %v1147, %v1147
        %v1198 = vpack.c.bf16 %v1149, %v1149
        %v1199 = vpack.c.bf16 %v1152, %v1152
        %v1200 = vpack.c.bf16 %v1154, %v1154
        %v1201 = vpack.c.bf16 %v1157, %v1157
        %v1202 = vpack.c.bf16 %v1159, %v1159
        %v1203 = vpack.c.bf16 %v1162, %v1162
        %v1204 = vpack.c.bf16 %v1164, %v1164
        %v1205 = vpack.c.bf16 %v1167, %v1167
        %v1206 = vpack.c.bf16 %v1169, %v1169
        %v1207 = vpack.c.bf16 %v1172, %v1172
        %v1208 = vpack.c.bf16 %v1174, %v1174
        %v1209 = vpack.c.bf16 %v1177, %v1177
        %v1210 = vpack.c.bf16 %v1179, %v1179
        %v1211 = vpack.c.bf16 %v1182, %v1182
        %v1212 = vpack.c.bf16 %v1184, %v1184
        %v1213 = vpack.c.bf16 %v1187, %v1187
        %v1214 = vpack.c.bf16 %v1189, %v1189
        %v1219 = vunpack.c.l.b16 %v1191
        %v1220 = vunpack.c.l.b16 %v1192
        %v1221 = vunpack.c.l.b16 %v1193
        %v1222 = vunpack.c.l.b16 %v1194
        %v1223 = vpack.c.b16 %v1220, %v1219
        %v1224 = vpack.c.b16 %v1222, %v1221
        %1227 = vxpose.xlu0.c.b16.start [1/8] %v1223, 128
        %1228 = vxpose.xlu0.c.b16.cont [2/8] %v1224, 128
        %1229 = vxpose.xlu0.c.b16.cont [3/8] 0, 128
        %1230 = vxpose.xlu0.c.b16.cont [4/8] 0, 128
        %1231 = vxpose.xlu0.c.b16.cont [5/8] 0, 128
        %1232 = vxpose.xlu0.c.b16.cont [6/8] 0, 128
        %1233 = vxpose.xlu0.c.b16.cont [7/8] 0, 128
        %1234 = vxpose.xlu0.c.b16.end [8/8] 0, 128
        %v1235 = vpop.trf.xlu0
        %v1236 = vpop.trf.xlu0
        %v1237 = vpop.trf.xlu0
        %v1238 = vpop.trf.xlu0
        %v1239 = vpop.trf.xlu0
        %v1240 = vpop.trf.xlu0
        %v1241 = vpop.trf.xlu0
        %v1242 = vpop.trf.xlu0
        %v1247 = vunpack.c.l.b16 %v1195
        %v1248 = vunpack.c.l.b16 %v1196
        %v1249 = vunpack.c.l.b16 %v1197
        %v1250 = vunpack.c.l.b16 %v1198
        %v1251 = vpack.c.b16 %v1248, %v1247
        %v1252 = vpack.c.b16 %v1250, %v1249
        %v1256 = vsel %vm436, %v1235, 0
        %v1259 = vsel %vm436, %v1236, 0
        %v1262 = vsel %vm436, %v1237, 0
        %v1265 = vsel %vm436, %v1238, 0
        %v1268 = vsel %vm436, %v1239, 0
        %v1271 = vsel %vm436, %v1240, 0
        %v1274 = vsel %vm436, %v1241, 0
        %v1277 = vsel %vm436, %v1242, 0
        %1279 = vmatpush.bf16.msra.mxu0 0
        %1280 = vmatpush.bf16.msra.mxu0 0
        %1281 = vmatpush.bf16.msra.mxu0 0
        %1282 = vmatpush.bf16.msra.mxu0 0
        %1283 = vmatpush.bf16.msra.mxu0 0
        %1284 = vmatpush.bf16.msra.mxu0 0
        %1285 = vmatpush.bf16.msra.mxu0 %v1252
        %1286 = vmatpush.bf16.msra.mxu0 %v1251
        %1287 = vmatmul.bf16.gmra.mxu0 %v1256
        %v1288 = vpop.f32.mrf.mxu0
        %v1289 = vadd.f32 %v365, %v1288
        %v1290 = vpop.f32.mrf.mxu0
        %v1291 = vadd.f32 %v365, %v1290
        %1292 = vmatmul.bf16.gmra.mxu0 %v1259
        %v1293 = vpop.f32.mrf.mxu0
        %v1294 = vadd.f32 %v365, %v1293
        %v1295 = vpop.f32.mrf.mxu0
        %v1296 = vadd.f32 %v365, %v1295
        %1297 = vmatmul.bf16.gmra.mxu0 %v1262
        %v1298 = vpop.f32.mrf.mxu0
        %v1299 = vadd.f32 %v365, %v1298
        %v1300 = vpop.f32.mrf.mxu0
        %v1301 = vadd.f32 %v365, %v1300
        %1302 = vmatmul.bf16.gmra.mxu0 %v1265
        %v1303 = vpop.f32.mrf.mxu0
        %v1304 = vadd.f32 %v365, %v1303
        %v1305 = vpop.f32.mrf.mxu0
        %v1306 = vadd.f32 %v365, %v1305
        %1307 = vmatmul.bf16.gmra.mxu0 %v1268
        %v1308 = vpop.f32.mrf.mxu0
        %v1309 = vadd.f32 %v365, %v1308
        %v1310 = vpop.f32.mrf.mxu0
        %v1311 = vadd.f32 %v365, %v1310
        %1312 = vmatmul.bf16.gmra.mxu0 %v1271
        %v1313 = vpop.f32.mrf.mxu0
        %v1314 = vadd.f32 %v365, %v1313
        %v1315 = vpop.f32.mrf.mxu0
        %v1316 = vadd.f32 %v365, %v1315
        %1317 = vmatmul.bf16.gmra.mxu0 %v1274
        %v1318 = vpop.f32.mrf.mxu0
        %v1319 = vadd.f32 %v365, %v1318
        %v1320 = vpop.f32.mrf.mxu0
        %v1321 = vadd.f32 %v365, %v1320
        %1322 = vmatmul.bf16.gmra.mxu0 %v1277
        %v1323 = vpop.f32.mrf.mxu0
        %v1324 = vadd.f32 %v365, %v1323
        %v1325 = vpop.f32.mrf.mxu0
        %v1326 = vadd.f32 %v365, %v1325
        %1327 = vdwg.mxu0
        %1328 = vmax.xlane.f32.xlu0 %v1289
        %v1329 = vpop.xlane.xlu0 %1328
        %1330 = vmax.xlane.f32.xlu0 %v1291
        %v1331 = vpop.xlane.xlu0 %1330
        %1332 = vmax.xlane.f32.xlu0 %v1294
        %v1333 = vpop.xlane.xlu0 %1332
        %1334 = vmax.xlane.f32.xlu0 %v1296
        %v1335 = vpop.xlane.xlu0 %1334
        %1336 = vmax.xlane.f32.xlu0 %v1299
        %v1337 = vpop.xlane.xlu0 %1336
        %1338 = vmax.xlane.f32.xlu0 %v1301
        %v1339 = vpop.xlane.xlu0 %1338
        %1340 = vmax.xlane.f32.xlu0 %v1304
        %v1341 = vpop.xlane.xlu0 %1340
        %1342 = vmax.xlane.f32.xlu0 %v1306
        %v1343 = vpop.xlane.xlu0 %1342
        %1344 = vmax.xlane.f32.xlu0 %v1309
        %v1345 = vpop.xlane.xlu0 %1344
        %1346 = vmax.xlane.f32.xlu0 %v1311
        %v1347 = vpop.xlane.xlu0 %1346
        %1348 = vmax.xlane.f32.xlu0 %v1314
        %v1349 = vpop.xlane.xlu0 %1348
        %1350 = vmax.xlane.f32.xlu0 %v1316
        %v1351 = vpop.xlane.xlu0 %1350
        %1352 = vmax.xlane.f32.xlu0 %v1319
        %v1353 = vpop.xlane.xlu0 %1352
        %1354 = vmax.xlane.f32.xlu0 %v1321
        %v1355 = vpop.xlane.xlu0 %1354
        %1356 = vmax.xlane.f32.xlu0 %v1324
        %v1357 = vpop.xlane.xlu0 %1356
        %1358 = vmax.xlane.f32.xlu0 %v1326
        %v1359 = vpop.xlane.xlu0 %1358
        %v1360 = vsub.f32 %v1289, %v1329
        %v1361 = vsub.f32 %v1291, %v1331
        %v1362 = vsub.f32 %v1294, %v1333
        %v1363 = vsub.f32 %v1296, %v1335
        %v1364 = vsub.f32 %v1299, %v1337
        %v1365 = vsub.f32 %v1301, %v1339
        %v1366 = vsub.f32 %v1304, %v1341
        %v1367 = vsub.f32 %v1306, %v1343
        %v1368 = vsub.f32 %v1309, %v1345
        %v1369 = vsub.f32 %v1311, %v1347
        %v1370 = vsub.f32 %v1314, %v1349
        %v1371 = vsub.f32 %v1316, %v1351
        %v1372 = vsub.f32 %v1319, %v1353
        %v1373 = vsub.f32 %v1321, %v1355
        %v1374 = vsub.f32 %v1324, %v1357
        %v1375 = vsub.f32 %v1326, %v1359
        %v1376 = vmul.f32 %v1360, 1.442695
        %v1377 = vpow.pop %v1376
        %v1378 = vmul.f32 %v1361, 1.442695
        %v1379 = vpow.pop %v1378
        %v1380 = vmul.f32 %v1362, 1.442695
        %v1381 = vpow.pop %v1380
        %v1382 = vmul.f32 %v1363, 1.442695
        %v1383 = vpow.pop %v1382
        %v1384 = vmul.f32 %v1364, 1.442695
        %v1385 = vpow.pop %v1384
        %v1386 = vmul.f32 %v1365, 1.442695
        %v1387 = vpow.pop %v1386
        %v1388 = vmul.f32 %v1366, 1.442695
        %v1389 = vpow.pop %v1388
        %v1390 = vmul.f32 %v1367, 1.442695
        %v1391 = vpow.pop %v1390
        %v1392 = vmul.f32 %v1368, 1.442695
        %v1393 = vpow.pop %v1392
        %v1394 = vmul.f32 %v1369, 1.442695
        %v1395 = vpow.pop %v1394
        %v1396 = vmul.f32 %v1370, 1.442695
        %v1397 = vpow.pop %v1396
        %v1398 = vmul.f32 %v1371, 1.442695
        %v1399 = vpow.pop %v1398
        %v1400 = vmul.f32 %v1372, 1.442695
        %v1401 = vpow.pop %v1400
        %v1402 = vmul.f32 %v1373, 1.442695
        %v1403 = vpow.pop %v1402
        %v1404 = vmul.f32 %v1374, 1.442695
        %v1405 = vpow.pop %v1404
        %v1406 = vmul.f32 %v1375, 1.442695
        %v1407 = vpow.pop %v1406
        %1408 = vadd.xlane.f32.xlu0 %v1377
        %v1409 = vpop.xlane.xlu0 %1408
        %1410 = vadd.xlane.f32.xlu0 %v1379
        %v1411 = vpop.xlane.xlu0 %1410
        %1412 = vadd.xlane.f32.xlu0 %v1381
        %v1413 = vpop.xlane.xlu0 %1412
        %1414 = vadd.xlane.f32.xlu0 %v1383
        %v1415 = vpop.xlane.xlu0 %1414
        %1416 = vadd.xlane.f32.xlu0 %v1385
        %v1417 = vpop.xlane.xlu0 %1416
        %1418 = vadd.xlane.f32.xlu0 %v1387
        %v1419 = vpop.xlane.xlu0 %1418
        %1420 = vadd.xlane.f32.xlu0 %v1389
        %v1421 = vpop.xlane.xlu0 %1420
        %1422 = vadd.xlane.f32.xlu0 %v1391
        %v1423 = vpop.xlane.xlu0 %1422
        %1424 = vadd.xlane.f32.xlu0 %v1393
        %v1425 = vpop.xlane.xlu0 %1424
        %1426 = vadd.xlane.f32.xlu0 %v1395
        %v1427 = vpop.xlane.xlu0 %1426
        %1428 = vadd.xlane.f32.xlu0 %v1397
        %v1429 = vpop.xlane.xlu0 %1428
        %1430 = vadd.xlane.f32.xlu0 %v1399
        %v1431 = vpop.xlane.xlu0 %1430
        %1432 = vadd.xlane.f32.xlu0 %v1401
        %v1433 = vpop.xlane.xlu0 %1432
        %1434 = vadd.xlane.f32.xlu0 %v1403
        %v1435 = vpop.xlane.xlu0 %1434
        %1436 = vadd.xlane.f32.xlu0 %v1405
        %v1437 = vpop.xlane.xlu0 %1436
        %1438 = vadd.xlane.f32.xlu0 %v1407
        %v1439 = vpop.xlane.xlu0 %1438
        %v1440 = vrcp.pop %v1409
        %v1441 = vrcp.pop %v1411
        %v1442 = vrcp.pop %v1413
        %v1443 = vrcp.pop %v1415
        %v1444 = vrcp.pop %v1417
        %v1445 = vrcp.pop %v1419
        %v1446 = vrcp.pop %v1421
        %v1447 = vrcp.pop %v1423
        %v1448 = vrcp.pop %v1425
        %v1449 = vrcp.pop %v1427
        %v1450 = vrcp.pop %v1429
        %v1451 = vrcp.pop %v1431
        %v1452 = vrcp.pop %v1433
        %v1453 = vrcp.pop %v1435
        %v1454 = vrcp.pop %v1437
        %v1455 = vrcp.pop %v1439
        %v1456 = vmul.f32 %v1377, %v1440
        %v1457 = vmul.f32 %v1379, %v1441
        %v1458 = vmul.f32 %v1381, %v1442
        %v1459 = vmul.f32 %v1383, %v1443
        %v1460 = vmul.f32 %v1385, %v1444
        %v1461 = vmul.f32 %v1387, %v1445
        %v1462 = vmul.f32 %v1389, %v1446
        %v1463 = vmul.f32 %v1391, %v1447
        %v1464 = vmul.f32 %v1393, %v1448
        %v1465 = vmul.f32 %v1395, %v1449
        %v1466 = vmul.f32 %v1397, %v1450
        %v1467 = vmul.f32 %v1399, %v1451
        %v1468 = vmul.f32 %v1401, %v1452
        %v1469 = vmul.f32 %v1403, %v1453
        %v1470 = vmul.f32 %v1405, %v1454
        %v1471 = vmul.f32 %v1407, %v1455
        %v1472 = vpack.c.bf16 %v1457, %v1456
        %v1473 = vpack.c.bf16 %v1459, %v1458
        %v1474 = vpack.c.bf16 %v1461, %v1460
        %v1475 = vpack.c.bf16 %v1463, %v1462
        %v1476 = vpack.c.bf16 %v1465, %v1464
        %v1477 = vpack.c.bf16 %v1467, %v1466
        %v1478 = vpack.c.bf16 %v1469, %v1468
        %v1479 = vpack.c.bf16 %v1471, %v1470
        %v1484 = vunpack.c.l.b16 %v1199
        %v1485 = vunpack.c.l.b16 %v1200
        %v1486 = vunpack.c.l.b16 %v1201
        %v1487 = vunpack.c.l.b16 %v1202
        %v1488 = vpack.c.b16 %v1485, %v1484
        %v1489 = vpack.c.b16 %v1487, %v1486
        %1492 = vmatpush.bf16.xpose.msra.mxu0 %v1479
        %1493 = vmatpush.bf16.xpose.msra.mxu0 %v1478
        %1494 = vmatpush.bf16.xpose.msra.mxu0 %v1477
        %1495 = vmatpush.bf16.xpose.msra.mxu0 %v1476
        %1496 = vmatpush.bf16.xpose.msra.mxu0 %v1475
        %1497 = vmatpush.bf16.xpose.msra.mxu0 %v1474
        %1498 = vmatpush.bf16.xpose.msra.mxu0 %v1473
        %1499 = vmatpush.bf16.xpose.msra.mxu0 %v1472
        %1500 = vmatmul.bf16.gmra.mxu0 %v1488
        %v1501 = vpop.f32.mrf.mxu0
        %v1502 = vadd.f32 0.0, %v1501
        %v1503 = vpop.f32.mrf.mxu0
        %v1504 = vadd.f32 0.0, %v1503
        %1505 = vmatmul.bf16.gmra.mxu0 %v1489
        %v1506 = vpop.f32.mrf.mxu0
        %v1507 = vadd.f32 0.0, %v1506
        %v1508 = vpop.f32.mrf.mxu0
        %v1509 = vadd.f32 0.0, %v1508
        %1510 = vdwg.mxu0
        %v1511 = vpack.c.bf16 %v1502, %v1502
        %v1512 = vpack.c.bf16 %v1504, %v1504
        %v1513 = vpack.c.bf16 %v1507, %v1507
        %v1514 = vpack.c.bf16 %v1509, %v1509
        %1515 = vst [vmem:[#allocation2] sm:$0xf] %v1511
        %1516 = vst [vmem:[#allocation2 + $0x4] sm:$0xf] %v1512
        %1517 = vst [vmem:[#allocation2 + $0x8] sm:$0xf] %v1513
        %1518 = vst [vmem:[#allocation2 + $0xc] sm:$0xf] %v1514
        %v1523 = vunpack.c.l.b16 %v1203
        %v1524 = vunpack.c.l.b16 %v1204
        %v1525 = vunpack.c.l.b16 %v1205
        %v1526 = vunpack.c.l.b16 %v1206
        %v1527 = vpack.c.b16 %v1524, %v1523
        %v1528 = vpack.c.b16 %v1526, %v1525
        %1531 = vxpose.xlu0.c.b16.start [1/8] %v1527, 128
        %1532 = vxpose.xlu0.c.b16.cont [2/8] %v1528, 128
        %1533 = vxpose.xlu0.c.b16.cont [3/8] 0, 128
        %1534 = vxpose.xlu0.c.b16.cont [4/8] 0, 128
        %1535 = vxpose.xlu0.c.b16.cont [5/8] 0, 128
        %1536 = vxpose.xlu0.c.b16.cont [6/8] 0, 128
        %1537 = vxpose.xlu0.c.b16.cont [7/8] 0, 128
        %1538 = vxpose.xlu0.c.b16.end [8/8] 0, 128
        %v1539 = vpop.trf.xlu0
        %v1540 = vpop.trf.xlu0
        %v1541 = vpop.trf.xlu0
        %v1542 = vpop.trf.xlu0
        %v1543 = vpop.trf.xlu0
        %v1544 = vpop.trf.xlu0
        %v1545 = vpop.trf.xlu0
        %v1546 = vpop.trf.xlu0
        %v1551 = vunpack.c.l.b16 %v1207
        %v1552 = vunpack.c.l.b16 %v1208
        %v1553 = vunpack.c.l.b16 %v1209
        %v1554 = vunpack.c.l.b16 %v1210
        %v1555 = vpack.c.b16 %v1552, %v1551
        %v1556 = vpack.c.b16 %v1554, %v1553
        %v1560 = vsel %vm436, %v1539, 0
        %v1563 = vsel %vm436, %v1540, 0
        %v1566 = vsel %vm436, %v1541, 0
        %v1569 = vsel %vm436, %v1542, 0
        %v1572 = vsel %vm436, %v1543, 0
        %v1575 = vsel %vm436, %v1544, 0
        %v1578 = vsel %vm436, %v1545, 0
        %v1581 = vsel %vm436, %v1546, 0
        %1583 = vmatpush.bf16.msra.mxu0 0
        %1584 = vmatpush.bf16.msra.mxu0 0
        %1585 = vmatpush.bf16.msra.mxu0 0
        %1586 = vmatpush.bf16.msra.mxu0 0
        %1587 = vmatpush.bf16.msra.mxu0 0
        %1588 = vmatpush.bf16.msra.mxu0 0
        %1589 = vmatpush.bf16.msra.mxu0 %v1556
        %1590 = vmatpush.bf16.msra.mxu0 %v1555
        %1591 = vmatmul.bf16.gmra.mxu0 %v1560
        %v1592 = vpop.f32.mrf.mxu0
        %v1593 = vadd.f32 %v365, %v1592
        %v1594 = vpop.f32.mrf.mxu0
        %v1595 = vadd.f32 %v365, %v1594
        %1596 = vmatmul.bf16.gmra.mxu0 %v1563
        %v1597 = vpop.f32.mrf.mxu0
        %v1598 = vadd.f32 %v365, %v1597
        %v1599 = vpop.f32.mrf.mxu0
        %v1600 = vadd.f32 %v365, %v1599
        %1601 = vmatmul.bf16.gmra.mxu0 %v1566
        %v1602 = vpop.f32.mrf.mxu0
        %v1603 = vadd.f32 %v365, %v1602
        %v1604 = vpop.f32.mrf.mxu0
        %v1605 = vadd.f32 %v365, %v1604
        %1606 = vmatmul.bf16.gmra.mxu0 %v1569
        %v1607 = vpop.f32.mrf.mxu0
        %v1608 = vadd.f32 %v365, %v1607
        %v1609 = vpop.f32.mrf.mxu0
        %v1610 = vadd.f32 %v365, %v1609
        %1611 = vmatmul.bf16.gmra.mxu0 %v1572
        %v1612 = vpop.f32.mrf.mxu0
        %v1613 = vadd.f32 %v365, %v1612
        %v1614 = vpop.f32.mrf.mxu0
        %v1615 = vadd.f32 %v365, %v1614
        %1616 = vmatmul.bf16.gmra.mxu0 %v1575
        %v1617 = vpop.f32.mrf.mxu0
        %v1618 = vadd.f32 %v365, %v1617
        %v1619 = vpop.f32.mrf.mxu0
        %v1620 = vadd.f32 %v365, %v1619
        %1621 = vmatmul.bf16.gmra.mxu0 %v1578
        %v1622 = vpop.f32.mrf.mxu0
        %v1623 = vadd.f32 %v365, %v1622
        %v1624 = vpop.f32.mrf.mxu0
        %v1625 = vadd.f32 %v365, %v1624
        %1626 = vmatmul.bf16.gmra.mxu0 %v1581
        %v1627 = vpop.f32.mrf.mxu0
        %v1628 = vadd.f32 %v365, %v1627
        %v1629 = vpop.f32.mrf.mxu0
        %v1630 = vadd.f32 %v365, %v1629
        %1631 = vdwg.mxu0
        %1632 = vmax.xlane.f32.xlu0 %v1593
        %v1633 = vpop.xlane.xlu0 %1632
        %1634 = vmax.xlane.f32.xlu0 %v1595
        %v1635 = vpop.xlane.xlu0 %1634
        %1636 = vmax.xlane.f32.xlu0 %v1598
        %v1637 = vpop.xlane.xlu0 %1636
        %1638 = vmax.xlane.f32.xlu0 %v1600
        %v1639 = vpop.xlane.xlu0 %1638
        %1640 = vmax.xlane.f32.xlu0 %v1603
        %v1641 = vpop.xlane.xlu0 %1640
        %1642 = vmax.xlane.f32.xlu0 %v1605
        %v1643 = vpop.xlane.xlu0 %1642
        %1644 = vmax.xlane.f32.xlu0 %v1608
        %v1645 = vpop.xlane.xlu0 %1644
        %1646 = vmax.xlane.f32.xlu0 %v1610
        %v1647 = vpop.xlane.xlu0 %1646
        %1648 = vmax.xlane.f32.xlu0 %v1613
        %v1649 = vpop.xlane.xlu0 %1648
        %1650 = vmax.xlane.f32.xlu0 %v1615
        %v1651 = vpop.xlane.xlu0 %1650
        %1652 = vmax.xlane.f32.xlu0 %v1618
        %v1653 = vpop.xlane.xlu0 %1652
        %1654 = vmax.xlane.f32.xlu0 %v1620
        %v1655 = vpop.xlane.xlu0 %1654
        %1656 = vmax.xlane.f32.xlu0 %v1623
        %v1657 = vpop.xlane.xlu0 %1656
        %1658 = vmax.xlane.f32.xlu0 %v1625
        %v1659 = vpop.xlane.xlu0 %1658
        %1660 = vmax.xlane.f32.xlu0 %v1628
        %v1661 = vpop.xlane.xlu0 %1660
        %1662 = vmax.xlane.f32.xlu0 %v1630
        %v1663 = vpop.xlane.xlu0 %1662
        %v1664 = vsub.f32 %v1593, %v1633
        %v1665 = vsub.f32 %v1595, %v1635
        %v1666 = vsub.f32 %v1598, %v1637
        %v1667 = vsub.f32 %v1600, %v1639
        %v1668 = vsub.f32 %v1603, %v1641
        %v1669 = vsub.f32 %v1605, %v1643
        %v1670 = vsub.f32 %v1608, %v1645
        %v1671 = vsub.f32 %v1610, %v1647
        %v1672 = vsub.f32 %v1613, %v1649
        %v1673 = vsub.f32 %v1615, %v1651
        %v1674 = vsub.f32 %v1618, %v1653
        %v1675 = vsub.f32 %v1620, %v1655
        %v1676 = vsub.f32 %v1623, %v1657
        %v1677 = vsub.f32 %v1625, %v1659
        %v1678 = vsub.f32 %v1628, %v1661
        %v1679 = vsub.f32 %v1630, %v1663
        %v1680 = vmul.f32 %v1664, 1.442695
        %v1681 = vpow.pop %v1680
        %v1682 = vmul.f32 %v1665, 1.442695
        %v1683 = vpow.pop %v1682
        %v1684 = vmul.f32 %v1666, 1.442695
        %v1685 = vpow.pop %v1684
        %v1686 = vmul.f32 %v1667, 1.442695
        %v1687 = vpow.pop %v1686
        %v1688 = vmul.f32 %v1668, 1.442695
        %v1689 = vpow.pop %v1688
        %v1690 = vmul.f32 %v1669, 1.442695
        %v1691 = vpow.pop %v1690
        %v1692 = vmul.f32 %v1670, 1.442695
        %v1693 = vpow.pop %v1692
        %v1694 = vmul.f32 %v1671, 1.442695
        %v1695 = vpow.pop %v1694
        %v1696 = vmul.f32 %v1672, 1.442695
        %v1697 = vpow.pop %v1696
        %v1698 = vmul.f32 %v1673, 1.442695
        %v1699 = vpow.pop %v1698
        %v1700 = vmul.f32 %v1674, 1.442695
        %v1701 = vpow.pop %v1700
        %v1702 = vmul.f32 %v1675, 1.442695
        %v1703 = vpow.pop %v1702
        %v1704 = vmul.f32 %v1676, 1.442695
        %v1705 = vpow.pop %v1704
        %v1706 = vmul.f32 %v1677, 1.442695
        %v1707 = vpow.pop %v1706
        %v1708 = vmul.f32 %v1678, 1.442695
        %v1709 = vpow.pop %v1708
        %v1710 = vmul.f32 %v1679, 1.442695
        %v1711 = vpow.pop %v1710
        %1712 = vadd.xlane.f32.xlu0 %v1681
        %v1713 = vpop.xlane.xlu0 %1712
        %1714 = vadd.xlane.f32.xlu0 %v1683
        %v1715 = vpop.xlane.xlu0 %1714
        %1716 = vadd.xlane.f32.xlu0 %v1685
        %v1717 = vpop.xlane.xlu0 %1716
        %1718 = vadd.xlane.f32.xlu0 %v1687
        %v1719 = vpop.xlane.xlu0 %1718
        %1720 = vadd.xlane.f32.xlu0 %v1689
        %v1721 = vpop.xlane.xlu0 %1720
        %1722 = vadd.xlane.f32.xlu0 %v1691
        %v1723 = vpop.xlane.xlu0 %1722
        %1724 = vadd.xlane.f32.xlu0 %v1693
        %v1725 = vpop.xlane.xlu0 %1724
        %1726 = vadd.xlane.f32.xlu0 %v1695
        %v1727 = vpop.xlane.xlu0 %1726
        %1728 = vadd.xlane.f32.xlu0 %v1697
        %v1729 = vpop.xlane.xlu0 %1728
        %1730 = vadd.xlane.f32.xlu0 %v1699
        %v1731 = vpop.xlane.xlu0 %1730
        %1732 = vadd.xlane.f32.xlu0 %v1701
        %v1733 = vpop.xlane.xlu0 %1732
        %1734 = vadd.xlane.f32.xlu0 %v1703
        %v1735 = vpop.xlane.xlu0 %1734
        %1736 = vadd.xlane.f32.xlu0 %v1705
        %v1737 = vpop.xlane.xlu0 %1736
        %1738 = vadd.xlane.f32.xlu0 %v1707
        %v1739 = vpop.xlane.xlu0 %1738
        %1740 = vadd.xlane.f32.xlu0 %v1709
        %v1741 = vpop.xlane.xlu0 %1740
        %1742 = vadd.xlane.f32.xlu0 %v1711
        %v1743 = vpop.xlane.xlu0 %1742
        %v1744 = vrcp.pop %v1713
        %v1745 = vrcp.pop %v1715
        %v1746 = vrcp.pop %v1717
        %v1747 = vrcp.pop %v1719
        %v1748 = vrcp.pop %v1721
        %v1749 = vrcp.pop %v1723
        %v1750 = vrcp.pop %v1725
        %v1751 = vrcp.pop %v1727
        %v1752 = vrcp.pop %v1729
        %v1753 = vrcp.pop %v1731
        %v1754 = vrcp.pop %v1733
        %v1755 = vrcp.pop %v1735
        %v1756 = vrcp.pop %v1737
        %v1757 = vrcp.pop %v1739
        %v1758 = vrcp.pop %v1741
        %v1759 = vrcp.pop %v1743
        %v1760 = vmul.f32 %v1681, %v1744
        %v1761 = vmul.f32 %v1683, %v1745
        %v1762 = vmul.f32 %v1685, %v1746
        %v1763 = vmul.f32 %v1687, %v1747
        %v1764 = vmul.f32 %v1689, %v1748
        %v1765 = vmul.f32 %v1691, %v1749
        %v1766 = vmul.f32 %v1693, %v1750
        %v1767 = vmul.f32 %v1695, %v1751
        %v1768 = vmul.f32 %v1697, %v1752
        %v1769 = vmul.f32 %v1699, %v1753
        %v1770 = vmul.f32 %v1701, %v1754
        %v1771 = vmul.f32 %v1703, %v1755
        %v1772 = vmul.f32 %v1705, %v1756
        %v1773 = vmul.f32 %v1707, %v1757
        %v1774 = vmul.f32 %v1709, %v1758
        %v1775 = vmul.f32 %v1711, %v1759
        %v1776 = vpack.c.bf16 %v1761, %v1760
        %v1777 = vpack.c.bf16 %v1763, %v1762
        %v1778 = vpack.c.bf16 %v1765, %v1764
        %v1779 = vpack.c.bf16 %v1767, %v1766
        %v1780 = vpack.c.bf16 %v1769, %v1768
        %v1781 = vpack.c.bf16 %v1771, %v1770
        %v1782 = vpack.c.bf16 %v1773, %v1772
        %v1783 = vpack.c.bf16 %v1775, %v1774
        %v1788 = vunpack.c.l.b16 %v1211
        %v1789 = vunpack.c.l.b16 %v1212
        %v1790 = vunpack.c.l.b16 %v1213
        %v1791 = vunpack.c.l.b16 %v1214
        %v1792 = vpack.c.b16 %v1789, %v1788
        %v1793 = vpack.c.b16 %v1791, %v1790
        %1796 = vmatpush.bf16.xpose.msra.mxu0 %v1783
        %1797 = vmatpush.bf16.xpose.msra.mxu0 %v1782
        %1798 = vmatpush.bf16.xpose.msra.mxu0 %v1781
        %1799 = vmatpush.bf16.xpose.msra.mxu0 %v1780
        %1800 = vmatpush.bf16.xpose.msra.mxu0 %v1779
        %1801 = vmatpush.bf16.xpose.msra.mxu0 %v1778
        %1802 = vmatpush.bf16.xpose.msra.mxu0 %v1777
        %1803 = vmatpush.bf16.xpose.msra.mxu0 %v1776
        %1804 = vmatmul.bf16.gmra.mxu0 %v1792
        %v1805 = vpop.f32.mrf.mxu0
        %v1806 = vadd.f32 0.0, %v1805
        %v1807 = vpop.f32.mrf.mxu0
        %v1808 = vadd.f32 0.0, %v1807
        %1809 = vmatmul.bf16.gmra.mxu0 %v1793
        %v1810 = vpop.f32.mrf.mxu0
        %v1811 = vadd.f32 0.0, %v1810
        %v1812 = vpop.f32.mrf.mxu0
        %v1813 = vadd.f32 0.0, %v1812
        %1814 = vdwg.mxu0
        %v1815 = vpack.c.bf16 %v1806, %v1806
        %v1816 = vpack.c.bf16 %v1808, %v1808
        %v1817 = vpack.c.bf16 %v1811, %v1811
        %v1818 = vpack.c.bf16 %v1813, %v1813
        %1819 = vst [vmem:[#allocation2 + $0x10] sm:$0xf] %v1815
        %1820 = vst [vmem:[#allocation2 + $0x14] sm:$0xf] %v1816
        %1821 = vst [vmem:[#allocation2 + $0x18] sm:$0xf] %v1817
        %1822 = vst [vmem:[#allocation2 + $0x1c] sm:$0xf] %v1818
        %v1823 = vld [vmem:[%s7] sm:$0xf]
        %v1824 = vld [vmem:[%s7 + $0x4] sm:$0xf]
        %v1825 = vld [vmem:[%s7 + $0x8] sm:$0xf]
        %v1826 = vld [vmem:[%s7 + $0xc] sm:$0xf]
        %v1827 = vld [vmem:[%s7 + $0x10] sm:$0xf]
        %v1828 = vld [vmem:[%s7 + $0x14] sm:$0xf]
        %v1829 = vld [vmem:[%s7 + $0x18] sm:$0xf]
        %v1830 = vld [vmem:[%s7 + $0x1c] sm:$0xf]
        %v1831 = vld [vmem:[#allocation2] sm:$0xf]
        %v1832 = vld [vmem:[#allocation2 + $0x4] sm:$0xf]
        %v1833 = vld [vmem:[#allocation2 + $0x8] sm:$0xf]
        %v1834 = vld [vmem:[#allocation2 + $0xc] sm:$0xf]
        %v1835 = vld [vmem:[#allocation2 + $0x10] sm:$0xf]
        %v1836 = vld [vmem:[#allocation2 + $0x14] sm:$0xf]
        %v1837 = vld [vmem:[#allocation2 + $0x18] sm:$0xf]
        %v1838 = vld [vmem:[#allocation2 + $0x1c] sm:$0xf]
        %v1847 = vunpack.c.l.b16 %v1823
        %v1848 = vunpack.c.l.b16 %v1824
        %v1849 = vunpack.c.l.b16 %v1825
        %v1850 = vunpack.c.l.b16 %v1826
        %v1851 = vunpack.c.l.b16 %v1827
        %v1852 = vunpack.c.l.b16 %v1828
        %v1853 = vunpack.c.l.b16 %v1829
        %v1854 = vunpack.c.l.b16 %v1830
        %v1855 = vpack.c.b16 %v1848, %v1847
        %v1856 = vpack.c.b16 %v1850, %v1849
        %v1857 = vpack.c.b16 %v1852, %v1851
        %v1858 = vpack.c.b16 %v1854, %v1853
        %v1867 = vunpack.c.l.b16 %v1831
        %v1868 = vunpack.c.l.b16 %v1832
        %v1869 = vunpack.c.l.b16 %v1833
        %v1870 = vunpack.c.l.b16 %v1834
        %v1871 = vunpack.c.l.b16 %v1835
        %v1872 = vunpack.c.l.b16 %v1836
        %v1873 = vunpack.c.l.b16 %v1837
        %v1874 = vunpack.c.l.b16 %v1838
        %v1875 = vpack.c.b16 %v1868, %v1867
        %v1876 = vpack.c.b16 %v1870, %v1869
        %v1877 = vpack.c.b16 %v1872, %v1871
        %v1878 = vpack.c.b16 %v1874, %v1873
        %v1884 = vsel %vm386, %v1855, 0
        %v1887 = vsel %vm386, %v1856, 0
        %v1890 = vsel %vm386, %v1857, 0
        %v1893 = vsel %vm386, %v1858, 0
        %1895 = vmatpush.bf16.msra.mxu0 0
        %1896 = vmatpush.bf16.msra.mxu0 0
        %1897 = vmatpush.bf16.msra.mxu0 0
        %1898 = vmatpush.bf16.msra.mxu0 0
        %1899 = vmatpush.bf16.msra.mxu0 %v1878
        %1900 = vmatpush.bf16.msra.mxu0 %v1877
        %1901 = vmatpush.bf16.msra.mxu0 %v1876
        %1902 = vmatpush.bf16.msra.mxu0 %v1875
        %1903 = vmatmul.bf16.gmra.mxu0 %v1884
        %v1904 = vpop.f32.mrf.mxu0
        %v1905 = vadd.f32 0.0, %v1904
        %v1906 = vpop.f32.mrf.mxu0
        %v1907 = vadd.f32 0.0, %v1906
        %1908 = vmatmul.bf16.gmra.mxu0 %v1887
        %v1909 = vpop.f32.mrf.mxu0
        %v1910 = vadd.f32 0.0, %v1909
        %v1911 = vpop.f32.mrf.mxu0
        %v1912 = vadd.f32 0.0, %v1911
        %1913 = vmatmul.bf16.gmra.mxu0 %v1890
        %v1914 = vpop.f32.mrf.mxu0
        %v1915 = vadd.f32 0.0, %v1914
        %v1916 = vpop.f32.mrf.mxu0
        %v1917 = vadd.f32 0.0, %v1916
        %1918 = vmatmul.bf16.gmra.mxu0 %v1893
        %v1919 = vpop.f32.mrf.mxu0
        %v1920 = vadd.f32 0.0, %v1919
        %v1921 = vpop.f32.mrf.mxu0
        %v1922 = vadd.f32 0.0, %v1921
        %1923 = vdwg.mxu0
        %v1924 = vadd.f32 %v354, %v1905
        %v1925 = vadd.f32 %v355, %v1907
        %v1926 = vadd.f32 %v356, %v1910
        %v1927 = vadd.f32 %v357, %v1912
        %v1928 = vadd.f32 %v358, %v1915
        %v1929 = vadd.f32 %v359, %v1917
        %v1930 = vadd.f32 %v360, %v1920
        %v1931 = vadd.f32 %v361, %v1922
        %v1932 = vld [vmem:[%s8] sm:$0xff]
        %v1933 = vld [vmem:[%s8 + $0x8] sm:$0xff]
        %v1934 = vld [vmem:[%s8 + $0x10] sm:$0xff]
        %v1935 = vld [vmem:[%s8 + $0x18] sm:$0xff]
        %v1936 = vld [vmem:[%s8 + $0x20] sm:$0xff]
        %v1937 = vld [vmem:[%s8 + $0x28] sm:$0xff]
        %v1938 = vld [vmem:[%s8 + $0x30] sm:$0xff]
        %v1939 = vld [vmem:[%s8 + $0x38] sm:$0xff]
        %1941 = vset.pattern.permute.xlu0 0
        %1942 = vperm.xlu0 %1941, %v1932
        %v1943 = vpop.permute.xlu0 %1942
        %1946 = vset.pattern.permute.xlu0 0
        %1947 = vperm.xlu0 %1946, %v1933
        %v1948 = vpop.permute.xlu0 %1947
        %1951 = vset.pattern.permute.xlu0 0
        %1952 = vperm.xlu0 %1951, %v1934
        %v1953 = vpop.permute.xlu0 %1952
        %1956 = vset.pattern.permute.xlu0 0
        %1957 = vperm.xlu0 %1956, %v1935
        %v1958 = vpop.permute.xlu0 %1957
        %1961 = vset.pattern.permute.xlu0 0
        %1962 = vperm.xlu0 %1961, %v1936
        %v1963 = vpop.permute.xlu0 %1962
        %1966 = vset.pattern.permute.xlu0 0
        %1967 = vperm.xlu0 %1966, %v1937
        %v1968 = vpop.permute.xlu0 %1967
        %1971 = vset.pattern.permute.xlu0 0
        %1972 = vperm.xlu0 %1971, %v1938
        %v1973 = vpop.permute.xlu0 %1972
        %1976 = vset.pattern.permute.xlu0 0
        %1977 = vperm.xlu0 %1976, %v1939
        %v1978 = vpop.permute.xlu0 %1977
        %v1980 = vadd.f32 %v1924, %v1943
        %v1981 = vadd.f32 %v1925, %v1948
        %v1982 = vadd.f32 %v1926, %v1953
        %v1983 = vadd.f32 %v1927, %v1958
        %v1984 = vadd.f32 %v1928, %v1963
        %v1985 = vadd.f32 %v1929, %v1968
        %v1986 = vadd.f32 %v1930, %v1973
        %v1987 = vadd.f32 %v1931, %v1978
        %1988 = vst [vmem:[%s352] sm:$0xff] %v1980
        %1989 = vst [vmem:[%s352 + $0x8] sm:$0xff] %v1981
        %1990 = vst [vmem:[%s352 + $0x10] sm:$0xff] %v1982
        %1991 = vst [vmem:[%s352 + $0x18] sm:$0xff] %v1983
        %1992 = vst [vmem:[%s352 + $0x20] sm:$0xff] %v1984
        %1993 = vst [vmem:[%s352 + $0x28] sm:$0xff] %v1985
        %1994 = vst [vmem:[%s352 + $0x30] sm:$0xff] %v1986
        %1995 = vst [vmem:[%s352 + $0x38] sm:$0xff] %v1987
        %s1996 = sand.u32 %s228, 1
        %s1997 = scalar_lea.sflag [#allocation5], %s1996
        %s1998 = sand.u32 %s228, 1
        %s1999 = smul.addr %s1998, 64
        %s2000 = scalar_lea.vmem [#allocation6], %s1999
        // Predicated region
        $region61: #{tpu_custom_call.1} parent=55 // pred_check
          %p2001 = pneg %p238
        $region62: #{tpu_custom_call.1} parent=55 // pred_check_branch
          %2003 = sbr.rel (%p2001) target = $region64
        $region63: #{tpu_custom_call.1} parent=55 // pred_region
          %2005 = vsyncadd %s1997, 0
          %s2006 = smul.addr %s26, 8
          %s2007 = smul.addr %s2006, 8
          %s2008 = scalar_lea.hbm %s9, %s2007
          %s2009 = sshll.u32 %s2000, 4
          %s2010 = int_to_ptr.vmem [resolvable:$true] %s2009
          %s2011 = sshll.u32 %s2008, 4
          %s2012 = int_to_ptr.hbm [resolvable:$true] %s2011
          %2017 = dma.vmem_to_hbm [thread:$0]  %s2010, 1024, %s2012, %s1997, 128, 128, 8
        $region64: #{tpu_custom_call.1} parent=55 // pred_fallthru
          _
      $region56: #{tpu_custom_call.1} parent=5 // pred_fallthru
        _
      %p2018 = scmp.le.s32.totalorder 2, %s21
      // Predicated region
      $region65: #{tpu_custom_call.1} parent=5 // pred_check
        %p2019 = pneg %p2018
      $region66: #{tpu_custom_call.1} parent=5 // pred_check_branch
        %2021 = sbr.rel (%p2019) target = $region68
      $region67: #{tpu_custom_call.1} parent=5 // pred_region
        %s2022 = ssub.s32 %s21, 2
        // Predicated region
        $region69: #{tpu_custom_call.1} parent=67 // pred_check
          %p2023 = pneg %p244
        $region70: #{tpu_custom_call.1} parent=67 // pred_check_branch
          %2025 = sbr.rel (%p2023) target = $region72
        $region71: #{tpu_custom_call.1} parent=67 // pred_region
          %s2026 = sand.u32 %s229, 1
          %s2027 = scalar_lea.sflag [#allocation5], %s2026
          %s2028 = sand.u32 %s229, 1
          %s2029 = smul.addr %s2028, 64
          %s2030 = scalar_lea.vmem [#allocation6], %s2029
          %2032 = dma.done %s2027, 1024
        $region72: #{tpu_custom_call.1} parent=67 // pred_fallthru
          _
      $region68: #{tpu_custom_call.1} parent=5 // pred_fallthru
        _
    $region6: #{tpu_custom_call.1} parent=1 // loop_footer
      %s25 = sadd.s32 1, %s21
    $region7: #{tpu_custom_call.1} parent=1 // loop_footer_branch
      %20 = sbr.rel target = $region3
    $region8: #{tpu_custom_call.1} parent=1 // loop_exit
      _
    %2033 = vsyncpa [#allocation4], 1
    %s2034 = scalar_lea.sflag [#allocation4], 1
    %2035 = vsyncpa %s2034, 1
    %2036 = vsyncpa [#allocation5], 1
    %s2037 = scalar_lea.sflag [#allocation5], 1
    %2038 = vsyncpa %s2037, 1

</llo_original>
